<compile_context>
chip_gen: v7x
topology: tpu7x:2x2x1
jax: 0.10.0
libtpu: 0.0.40
codegen_flags: <defaults>
</compile_context>

<pallas_src>
import functools

import jax
import jax.numpy as jnp
from jax.experimental import pallas as pl
from jax.experimental.pallas import tpu as pltpu

MASK_FILL = -1e30    # additive fill for non-edges (Python float, not traced)
M_INIT = -1e6        # online-softmax running-max init; real scores >> M_INIT
LEAKY_SLOPE = 0.2


# ---------------------------------------------------------------------------
# Stage 1: per-layer projection (hoisted out of the dst/src tile loops).
# ---------------------------------------------------------------------------
def _gat_project_kernel(h_ref, w_ref, al_ref, ar_ref, *rest,
                        num_heads, head_dim, projected_residual):
    if projected_residual:
        wres_ref, feat_ref, el_ref, er_ref, hres_ref = rest
    else:
        feat_ref, el_ref, er_ref = rest

    h = h_ref[...]                                              # [TP, Din] bf16
    feat = jnp.dot(h, w_ref[...], preferred_element_type=jnp.float32)  # [TP, HF]

    al = al_ref[...]                                            # [H, F]
    ar = ar_ref[...]
    el_cols, er_cols = [], []
    for hh in range(num_heads):                                 # static unroll
        lo = hh * head_dim
        fh = feat[:, lo:lo + head_dim]                          # [TP, F]
        el_cols.append(jnp.sum(fh * al[hh:hh + 1, :], axis=-1, keepdims=True))
        er_cols.append(jnp.sum(fh * ar[hh:hh + 1, :], axis=-1, keepdims=True))
    el_ref[...] = jnp.concatenate(el_cols, axis=-1)             # [TP, H]
    er_ref[...] = jnp.concatenate(er_cols, axis=-1)             # [TP, H]
    feat_ref[...] = feat.astype(jnp.bfloat16)                   # bf16 for aggregation

    if projected_residual:
        hres_ref[...] = jnp.dot(h, wres_ref[...],
                                preferred_element_type=jnp.float32)


# ---------------------------------------------------------------------------
# Stage 2: masked softmax + aggregation with online (flash-style) softmax.
# Grid = (dst tiles [parallel], src tiles [arbitrary, last]).
# ---------------------------------------------------------------------------
def _gat_attn_kernel(er_ref, el_ref, adj_ref, feat_ref, b_ref, *rest,
                     num_heads, head_dim, has_residual, apply_relu):
    if has_residual:
        res_ref, out_ref, m_sc, l_sc, acc_sc = rest
    else:
        out_ref, m_sc, l_sc, acc_sc = rest

    j = pl.program_id(1)

    @pl.when(j == 0)
    def _():
        m_sc[...] = jnp.full(m_sc.shape, M_INIT, jnp.float32)
        l_sc[...] = jnp.zeros(l_sc.shape, jnp.float32)
        acc_sc[...] = jnp.zeros(acc_sc.shape, jnp.float32)

    er = er_ref[...]                       # [TM, H] f32   (dst tile)
    el = el_ref[...]                       # [H, TN] f32   (src tile, pre-transposed)
    nb = adj_ref[...].astype(jnp.float32) > 0.0   # [TM, TN] from int8 adjacency
    feat = feat_ref[...]                   # [TN, HF] bf16 (src tile)

    m_prev = m_sc[...]                     # [TM, H]
    l_prev = l_sc[...]                     # [TM, H]
    acc_prev = acc_sc[...]                 # [TM, HF]

    m_cols, l_cols, acc_cols = [], [], []
    for hh in range(num_heads):            # static unroll, H small
        lo = hh * head_dim
        s = er[:, hh:hh + 1] + el[hh:hh + 1, :]              # [TM, TN]
        s = jnp.where(s >= 0, s, LEAKY_SLOPE * s)            # leaky_relu(0.2)
        s = jnp.where(nb, s, MASK_FILL)                      # mask non-edges

        mp = m_prev[:, hh:hh + 1]                            # [TM, 1]
        mn = jnp.maximum(mp, jnp.max(s, axis=-1, keepdims=True))
        corr = jnp.exp(mp - mn)
        # Masked entries: exp(MASK_FILL - mn) underflows to exactly 0 because
        # mn >= M_INIT >> MASK_FILL (self-loops guarantee a finite row max).
        p = jnp.exp(s - mn)                                  # [TM, TN]

        l_cols.append(corr * l_prev[:, hh:hh + 1]
                      + jnp.sum(p, axis=-1, keepdims=True))
        pv = jnp.dot(p.astype(jnp.bfloat16), feat[:, lo:lo + head_dim],
                     preferred_element_type=jnp.float32)     # [TM, F]
        acc_cols.append(corr * acc_prev[:, lo:lo + head_dim] + pv)
        m_cols.append(mn)

    # Single lane-dense store per scratch buffer (no per-head partial stores).
    m_sc[...] = jnp.concatenate(m_cols, axis=-1)
    l_sc[...] = jnp.concatenate(l_cols, axis=-1)
    acc_sc[...] = jnp.concatenate(acc_cols, axis=-1)

    @pl.when(j == pl.num_programs(1) - 1)
    def _():
        # denom guard only matters without self-loops (output ~0 instead of NaN)
        inv_l = pl.reciprocal(jnp.maximum(l_sc[...], 1e-30), approx=True)  # [TM, H]
        acc = acc_sc[...]
        cols = []
        for hh in range(num_heads):
            lo = hh * head_dim
            cols.append(acc[:, lo:lo + head_dim] * inv_l[:, hh:hh + 1])
        rst = jnp.concatenate(cols, axis=-1)                 # [TM, HF]
        if has_residual:
            rst = rst + res_ref[...]
        rst = rst + b_ref[...]
        if apply_relu:
            rst = jnp.maximum(rst, 0.0)
        out_ref[...] = rst


def _pick_block(n, align, cap):
    """Largest multiple of `align`, <= cap, dividing n, giving >= 2 tiles.

    Falls back to the full extent (single tile) if no aligned divisor exists,
    which keeps all BlockSpecs legal and avoids padded-garbage source columns.
    """
    hi = min(cap, n // 2)
    hi = (hi // align) * align
    b = hi
    while b >= align:
        if n % b == 0:
            return b
        b -= align
    return n


def gat_conv(h, adj_i8, w, attn_l, attn_r, wres, bias, *,
             residual_mode, apply_relu,
             block_m=None, block_n=None, block_p=None, vmem_limit_bytes=None):
    """One GATConv layer, all heads fused. Returns lane-dense [N, H*F] f32."""
    n, din = h.shape
    num_heads, fdim = attn_l.shape
    hf = num_heads * fdim

    # Tiling: dst tiles 32-aligned (int8 adjacency sublane), src tiles
    # 128-aligned (adjacency / el lane dim).  Caps fit the 32 MiB default
    # scoped VMEM; for big graphs on v5e/v6e raise caps + vmem_limit_bytes,
    # on v7x (64 MiB) keep block_m*block_n modest.
    if block_m is None:
        block_m = _pick_block(n, 32, 256)
    if block_n is None:
        block_n = _pick_block(n, 128, 512)
    if block_p is None:
        block_p = _pick_block(n, 32, 256)

    h_bf = h.astype(jnp.bfloat16)
    w_bf = w.astype(jnp.bfloat16)
    projected = residual_mode == "projected"

    # ---- Stage 1: projection (once per layer, not per dst tile) ------------
    proj_in_specs = [
        pl.BlockSpec((block_p, din), lambda i: (i, 0)),          # h (bf16)
        pl.BlockSpec((din, hf), lambda i: (0, 0)),               # W (bf16)
        pl.BlockSpec((num_heads, fdim), lambda i: (0, 0)),       # a_l
        pl.BlockSpec((num_heads, fdim), lambda i: (0, 0)),       # a_r
    ]
    proj_args = [h_bf, w_bf, attn_l, attn_r]
    proj_out_shape = [
        jax.ShapeDtypeStruct((n, hf), jnp.bfloat16),             # feat (bf16)
        jax.ShapeDtypeStruct((n, num_heads), jnp.float32),       # el
        jax.ShapeDtypeStruct((n, num_heads), jnp.float32),       # er
    ]
    proj_out_specs = [
        pl.BlockSpec((block_p, hf), lambda i: (i, 0)),
        pl.BlockSpec((block_p, num_heads), lambda i: (i, 0)),
        pl.BlockSpec((block_p, num_heads), lambda i: (i, 0)),
    ]
    if projected:
        proj_in_specs.append(pl.BlockSpec((din, hf), lambda i: (0, 0)))
        proj_args.append(wres.astype(jnp.bfloat16))
        proj_out_shape.append(jax.ShapeDtypeStruct((n, hf), jnp.float32))
        proj_out_specs.append(pl.BlockSpec((block_p, hf), lambda i: (i, 0)))

    proj_kernel = functools.partial(
        _gat_project_kernel, num_heads=num_heads, head_dim=fdim,
        projected_residual=projected)

    proj_out = pl.pallas_call(
        proj_kernel,
        out_shape=tuple(proj_out_shape),
        grid_spec=pltpu.PrefetchScalarGridSpec(
            num_scalar_prefetch=0,
            grid=(pl.cdiv(n, block_p),),
            in_specs=proj_in_specs,
            out_specs=tuple(proj_out_specs),
        ),
        compiler_params=pltpu.CompilerParams(
            dimension_semantics=("parallel",),
            vmem_limit_bytes=vmem_limit_bytes),
    )(*proj_args)

    if projected:
        feat_bf, el, er, res = proj_out
    else:
        feat_bf, el, er = proj_out
        res = h if residual_mode == "identity" else None
    el_t = el.T   # [H, N]: kernel reads the source term as a [1, TN] row

    # ---- Stage 2: masked softmax + aggregation ------------------------------
    has_res = res is not None
    attn_in_specs = [
        pl.BlockSpec((block_m, num_heads), lambda i, j: (i, 0)),   # er (dst)
        pl.BlockSpec((num_heads, block_n), lambda i, j: (0, j)),   # el^T (src)
        pl.BlockSpec((block_m, block_n), lambda i, j: (i, j)),     # adj (int8)
        pl.BlockSpec((block_n, hf), lambda i, j: (j, 0)),          # feat (src)
        pl.BlockSpec((1, hf), lambda i, j: (0, 0)),                # bias
    ]
    attn_args = [er, el_t, adj_i8, feat_bf, bias]
    if has_res:
        attn_in_specs.append(pl.BlockSpec((block_m, hf), lambda i, j: (i, 0)))
        attn_args.append(res)

    attn_kernel = functools.partial(
        _gat_attn_kernel, num_heads=num_heads, head_dim=fdim,
        has_residual=has_res, apply_relu=apply_relu)

    return pl.pallas_call(
        attn_kernel,
        out_shape=jax.ShapeDtypeStruct((n, hf), jnp.float32),
        grid_spec=pltpu.PrefetchScalarGridSpec(
            num_scalar_prefetch=0,
            grid=(pl.cdiv(n, block_m), pl.cdiv(n, block_n)),
            in_specs=attn_in_specs,
            out_specs=pl.BlockSpec((block_m, hf), lambda i, j: (i, 0)),
            scratch_shapes=[
                pltpu.VMEM((block_m, num_heads), jnp.float32),   # running max
                pltpu.VMEM((block_m, num_heads), jnp.float32),   # running denom
                pltpu.VMEM((block_m, hf), jnp.float32),          # accumulator
            ],
        ),
        compiler_params=pltpu.CompilerParams(
            dimension_semantics=("parallel", "arbitrary"),
            vmem_limit_bytes=vmem_limit_bytes),
    )(*attn_args)


def gat_conv_ref(h, adj_i8, w, attn_l, attn_r, wres, bias, *,
                 residual_mode, apply_relu, **_):
    """Pure-JAX f32 reference (same math) for validation."""
    num_heads, fdim = attn_l.shape
    feat = h @ w                                             # [N, H*F]
    mask = adj_i8 > 0
    outs = []
    for hh in range(num_heads):
        fh = feat[:, hh * fdim:(hh + 1) * fdim]
        el = (fh * attn_l[hh]).sum(-1, keepdims=True)
        er = (fh * attn_r[hh]).sum(-1, keepdims=True)
        s = er + el.T
        s = jnp.where(s >= 0, s, LEAKY_SLOPE * s)
        sm = jnp.where(mask, s, MASK_FILL)
        p = jnp.where(mask, jnp.exp(sm - sm.max(-1, keepdims=True)), 0.0)
        a = p / p.sum(-1, keepdims=True)
        outs.append(a @ fh)
    rst = jnp.concatenate(outs, axis=-1)
    if residual_mode == "identity":
        rst = rst + h
    elif residual_mode == "projected":
        rst = rst + h @ wres
    rst = rst + bias
    if apply_relu:
        rst = jnp.maximum(rst, 0.0)
    return rst


def gat_forward(adj, x, params, conv_fn):
    """Mirrors GAT.forward: flatten heads for hidden layers, mean for last."""
    h = x
    n_layers = len(params)
    for i, p in enumerate(params):
        out = conv_fn(h, adj, p["w"], p["al"], p["ar"], p["wres"], p["b"],
                      residual_mode=p["residual_mode"],
                      apply_relu=(i < n_layers - 1))          # [N, H*F]
        if i == n_layers - 1:
            n = out.shape[0]
            h = out.reshape(n, p["heads"], p["fdim"]).mean(axis=1)   # h.mean(1)
        else:
            h = out                                           # h.flatten(1) free
    return h


def make_params(key, in_size, hid_size, out_size, heads):
    """Deterministic parameter init with the same shapes as dglnn.GATConv."""
    sizes_in = [in_size, hid_size * heads[0], hid_size * heads[1]]
    sizes_out = [hid_size, hid_size, out_size]
    residual = [False, True, True]
    params = []
    for i in range(3):
        din, f, hds = sizes_in[i], sizes_out[i], heads[i]
        key, k1, k2, k3, k4 = jax.random.split(key, 5)
        w_all = jax.random.normal(k1, (din, hds * f), jnp.float32) / jnp.sqrt(din)
        al = jax.random.normal(k2, (hds, f), jnp.float32) * 0.1
        ar = jax.random.normal(k3, (hds, f), jnp.float32) * 0.1
        b = jnp.zeros((1, hds * f), jnp.float32)   # DGL inits bias to zeros
        if not residual[i]:
            mode = "none"
            wres = jnp.zeros((1, 1), jnp.float32)             # unused
        elif din == hds * f:
            mode = "identity"                                 # Identity res_fc
            wres = jnp.zeros((1, 1), jnp.float32)             # unused
        else:
            mode = "projected"
            wres = jax.random.normal(k4, (din, hds * f), jnp.float32) / jnp.sqrt(din)
        params.append(dict(w=w_all, al=al, ar=ar, wres=wres, b=b,
                           residual_mode=mode, heads=hds, fdim=f))
    return params


if __name__ == "__main__":
    N = 256
    in_size, hid_size, out_size = 32, 32, 8
    heads = (4, 4, 4)

    key = jax.random.PRNGKey(0)
    key, kx = jax.random.split(key)
    x = jax.random.normal(kx, (N, in_size), jnp.float32)

    # Deterministic graph: directed ring + self loops (SELF_LOOP = True),
    # adjacency stored as int8 (dst-major: adj[v, u] = 1 iff edge u -> v).
    src = jnp.arange(N)
    dst = (src + 1) % N
    adj = jnp.zeros((N, N), jnp.int8)
    adj = adj.at[dst, src].set(1)       # edge u -> (u+1) % N
    adj = adj.at[src, src].set(1)       # self loops

    params = make_params(key, in_size, hid_size, out_size, heads)

    out = gat_forward(adj, x, params, gat_conv)
    out = jax.block_until_ready(out)

    ref = gat_forward(adj, x, params, gat_conv_ref)
    assert out.shape == (N, out_size), out.shape
    assert bool(jnp.all(jnp.isfinite(out)))
    # bf16 MXU operands + approx reciprocal => slightly looser tolerance vs f32.
    assert bool(jnp.allclose(out, ref, atol=5e-2, rtol=5e-2)), \
        float(jnp.max(jnp.abs(out - ref)))
    print("KERNEL_OK")
</pallas_src>

<mosaic_0001>
module attributes {stable_mosaic.version = 11 : i64} {
  func.func @_gat_project_kernel(%arg0: i32, %arg1: memref<128x32xbf16, #tpu.memory_space<vmem>>, %arg2: memref<32x128xbf16, #tpu.memory_space<vmem>>, %arg3: memref<4x32xf32, #tpu.memory_space<vmem>>, %arg4: memref<4x32xf32, #tpu.memory_space<vmem>>, %arg5: memref<128x128xbf16, #tpu.memory_space<vmem>>, %arg6: memref<128x4xf32, #tpu.memory_space<vmem>>, %arg7: memref<128x4xf32, #tpu.memory_space<vmem>>) attributes {dimension_semantics = [#tpu.dimension_semantics<parallel>], iteration_bounds = array<i64: 2>, scalar_prefetch = 0 : i64, scratch_operands = 0 : i64, tpu.core_type = #tpu.core_type<tc>, window_params = [{transform_indices = @transform_0, window_bounds = array<i64: 128, 32>}, {pipeline_mode = #tpu.pipeline_mode<synchronous>, transform_indices = @transform_1, window_bounds = array<i64: 32, 128>}, {pipeline_mode = #tpu.pipeline_mode<synchronous>, transform_indices = @transform_2, window_bounds = array<i64: 4, 32>}, {pipeline_mode = #tpu.pipeline_mode<synchronous>, transform_indices = @transform_3, window_bounds = array<i64: 4, 32>}, {transform_indices = @transform_4, window_bounds = array<i64: 128, 128>}, {transform_indices = @transform_5, window_bounds = array<i64: 128, 4>}, {transform_indices = @transform_6, window_bounds = array<i64: 128, 4>}]} {
    %c0 = arith.constant 0 : index
    %c0_0 = arith.constant 0 : index
    %0 = vector.load %arg1[%c0, %c0_0] : memref<128x32xbf16, #tpu.memory_space<vmem>>, vector<128x32xbf16>
    %c0_1 = arith.constant 0 : index
    %c0_2 = arith.constant 0 : index
    %1 = vector.load %arg2[%c0_1, %c0_2] : memref<32x128xbf16, #tpu.memory_space<vmem>>, vector<32x128xbf16>
    %cst = arith.constant dense<0.000000e+00> : vector<128x128xf32>
    %2 = tpu.matmul %0, %1, %cst {dimension_numbers = #tpu.dot_dimension_numbers<[1], [0], [0], [1], [0, 0, 1, 1], [], []>} : vector<128x32xbf16>, vector<32x128xbf16>, vector<128x128xf32> -> vector<128x128xf32>
    %c0_3 = arith.constant 0 : index
    %c0_4 = arith.constant 0 : index
    %3 = vector.load %arg3[%c0_3, %c0_4] : memref<4x32xf32, #tpu.memory_space<vmem>>, vector<4x32xf32>
    %c0_5 = arith.constant 0 : index
    %c0_6 = arith.constant 0 : index
    %4 = vector.load %arg4[%c0_5, %c0_6] : memref<4x32xf32, #tpu.memory_space<vmem>>, vector<4x32xf32>
    %5 = vector.extract_strided_slice %2 {offsets = [0, 0], sizes = [128, 32], strides = [1, 1]} : vector<128x128xf32> to vector<128x32xf32>
    %6 = vector.extract_strided_slice %3 {offsets = [0, 0], sizes = [1, 32], strides = [1, 1]} : vector<4x32xf32> to vector<1x32xf32>
    %7 = vector.broadcast %6 : vector<1x32xf32> to vector<128x32xf32>
    %8 = arith.mulf %5, %7 : vector<128x32xf32>
    %cst_7 = arith.constant dense<0.000000e+00> : vector<128xf32>
    %9 = vector.multi_reduction <add>, %8, %cst_7 [1] : vector<128x32xf32> to vector<128xf32>
    %10 = vector.shape_cast %9 : vector<128xf32> to vector<128x1xf32>
    %11 = vector.extract_strided_slice %4 {offsets = [0, 0], sizes = [1, 32], strides = [1, 1]} : vector<4x32xf32> to vector<1x32xf32>
    %12 = vector.broadcast %11 : vector<1x32xf32> to vector<128x32xf32>
    %13 = arith.mulf %5, %12 : vector<128x32xf32>
    %cst_8 = arith.constant dense<0.000000e+00> : vector<128xf32>
    %14 = vector.multi_reduction <add>, %13, %cst_8 [1] : vector<128x32xf32> to vector<128xf32>
    %15 = vector.shape_cast %14 : vector<128xf32> to vector<128x1xf32>
    %16 = vector.extract_strided_slice %2 {offsets = [0, 32], sizes = [128, 32], strides = [1, 1]} : vector<128x128xf32> to vector<128x32xf32>
    %17 = vector.extract_strided_slice %3 {offsets = [1, 0], sizes = [1, 32], strides = [1, 1]} : vector<4x32xf32> to vector<1x32xf32>
    %18 = vector.broadcast %17 : vector<1x32xf32> to vector<128x32xf32>
    %19 = arith.mulf %16, %18 : vector<128x32xf32>
    %cst_9 = arith.constant dense<0.000000e+00> : vector<128xf32>
    %20 = vector.multi_reduction <add>, %19, %cst_9 [1] : vector<128x32xf32> to vector<128xf32>
    %21 = vector.shape_cast %20 : vector<128xf32> to vector<128x1xf32>
    %22 = vector.extract_strided_slice %4 {offsets = [1, 0], sizes = [1, 32], strides = [1, 1]} : vector<4x32xf32> to vector<1x32xf32>
    %23 = vector.broadcast %22 : vector<1x32xf32> to vector<128x32xf32>
    %24 = arith.mulf %16, %23 : vector<128x32xf32>
    %cst_10 = arith.constant dense<0.000000e+00> : vector<128xf32>
    %25 = vector.multi_reduction <add>, %24, %cst_10 [1] : vector<128x32xf32> to vector<128xf32>
    %26 = vector.shape_cast %25 : vector<128xf32> to vector<128x1xf32>
    %27 = vector.extract_strided_slice %2 {offsets = [0, 64], sizes = [128, 32], strides = [1, 1]} : vector<128x128xf32> to vector<128x32xf32>
    %28 = vector.extract_strided_slice %3 {offsets = [2, 0], sizes = [1, 32], strides = [1, 1]} : vector<4x32xf32> to vector<1x32xf32>
    %29 = vector.broadcast %28 : vector<1x32xf32> to vector<128x32xf32>
    %30 = arith.mulf %27, %29 : vector<128x32xf32>
    %cst_11 = arith.constant dense<0.000000e+00> : vector<128xf32>
    %31 = vector.multi_reduction <add>, %30, %cst_11 [1] : vector<128x32xf32> to vector<128xf32>
    %32 = vector.shape_cast %31 : vector<128xf32> to vector<128x1xf32>
    %33 = vector.extract_strided_slice %4 {offsets = [2, 0], sizes = [1, 32], strides = [1, 1]} : vector<4x32xf32> to vector<1x32xf32>
    %34 = vector.broadcast %33 : vector<1x32xf32> to vector<128x32xf32>
    %35 = arith.mulf %27, %34 : vector<128x32xf32>
    %cst_12 = arith.constant dense<0.000000e+00> : vector<128xf32>
    %36 = vector.multi_reduction <add>, %35, %cst_12 [1] : vector<128x32xf32> to vector<128xf32>
    %37 = vector.shape_cast %36 : vector<128xf32> to vector<128x1xf32>
    %38 = vector.extract_strided_slice %2 {offsets = [0, 96], sizes = [128, 32], strides = [1, 1]} : vector<128x128xf32> to vector<128x32xf32>
    %39 = vector.extract_strided_slice %3 {offsets = [3, 0], sizes = [1, 32], strides = [1, 1]} : vector<4x32xf32> to vector<1x32xf32>
    %40 = vector.broadcast %39 : vector<1x32xf32> to vector<128x32xf32>
    %41 = arith.mulf %38, %40 : vector<128x32xf32>
    %cst_13 = arith.constant dense<0.000000e+00> : vector<128xf32>
    %42 = vector.multi_reduction <add>, %41, %cst_13 [1] : vector<128x32xf32> to vector<128xf32>
    %43 = vector.shape_cast %42 : vector<128xf32> to vector<128x1xf32>
    %44 = vector.extract_strided_slice %4 {offsets = [3, 0], sizes = [1, 32], strides = [1, 1]} : vector<4x32xf32> to vector<1x32xf32>
    %45 = vector.broadcast %44 : vector<1x32xf32> to vector<128x32xf32>
    %46 = arith.mulf %38, %45 : vector<128x32xf32>
    %cst_14 = arith.constant dense<0.000000e+00> : vector<128xf32>
    %47 = vector.multi_reduction <add>, %46, %cst_14 [1] : vector<128x32xf32> to vector<128xf32>
    %48 = vector.shape_cast %47 : vector<128xf32> to vector<128x1xf32>
    %49 = tpu.concatenate %10, %21, %32, %43 in 1 : vector<128x1xf32>, vector<128x1xf32>, vector<128x1xf32>, vector<128x1xf32> -> vector<128x4xf32>
    %c0_15 = arith.constant 0 : index
    %c0_16 = arith.constant 0 : index
    %50 = vector.load %arg6[%c0_15, %c0_16] : memref<128x4xf32, #tpu.memory_space<vmem>>, vector<128x4xf32>
    tpu.vector_store %arg6[%c0_15, %c0_16], %49 {strides = array<i32>} : memref<128x4xf32, #tpu.memory_space<vmem>>, vector<128x4xf32>,
    %51 = tpu.concatenate %15, %26, %37, %48 in 1 : vector<128x1xf32>, vector<128x1xf32>, vector<128x1xf32>, vector<128x1xf32> -> vector<128x4xf32>
    %c0_17 = arith.constant 0 : index
    %c0_18 = arith.constant 0 : index
    %52 = vector.load %arg7[%c0_17, %c0_18] : memref<128x4xf32, #tpu.memory_space<vmem>>, vector<128x4xf32>
    tpu.vector_store %arg7[%c0_17, %c0_18], %51 {strides = array<i32>} : memref<128x4xf32, #tpu.memory_space<vmem>>, vector<128x4xf32>,
    %53 = arith.truncf %2 : vector<128x128xf32> to vector<128x128xbf16>
    %c0_19 = arith.constant 0 : index
    %c0_20 = arith.constant 0 : index
    %54 = vector.load %arg5[%c0_19, %c0_20] : memref<128x128xbf16, #tpu.memory_space<vmem>>, vector<128x128xbf16>
    tpu.vector_store %arg5[%c0_19, %c0_20], %53 {strides = array<i32>} : memref<128x128xbf16, #tpu.memory_space<vmem>>, vector<128x128xbf16>,
    return
  }
  func.func @transform_0(%arg0: i32) -> (i32, i32) {
    %c0_i32 = arith.constant 0 : i32
    %c0_i32_0 = arith.constant 0 : i32
    return %arg0, %c0_i32 : i32, i32
  }
  func.func @transform_1(%arg0: i32) -> (i32, i32) {
    %c0_i32 = arith.constant 0 : i32
    %c0_i32_0 = arith.constant 0 : i32
    %c0_i32_1 = arith.constant 0 : i32
    return %c0_i32, %c0_i32_0 : i32, i32
  }
  func.func @transform_2(%arg0: i32) -> (i32, i32) {
    %c0_i32 = arith.constant 0 : i32
    %c0_i32_0 = arith.constant 0 : i32
    %c0_i32_1 = arith.constant 0 : i32
    return %c0_i32, %c0_i32_0 : i32, i32
  }
  func.func @transform_3(%arg0: i32) -> (i32, i32) {
    %c0_i32 = arith.constant 0 : i32
    %c0_i32_0 = arith.constant 0 : i32
    %c0_i32_1 = arith.constant 0 : i32
    return %c0_i32, %c0_i32_0 : i32, i32
  }
  func.func @transform_4(%arg0: i32) -> (i32, i32) {
    %c0_i32 = arith.constant 0 : i32
    %c0_i32_0 = arith.constant 0 : i32
    return %arg0, %c0_i32 : i32, i32
  }
  func.func @transform_5(%arg0: i32) -> (i32, i32) {
    %c0_i32 = arith.constant 0 : i32
    %c0_i32_0 = arith.constant 0 : i32
    return %arg0, %c0_i32 : i32, i32
  }
  func.func @transform_6(%arg0: i32) -> (i32, i32) {
    %c0_i32 = arith.constant 0 : i32
    %c0_i32_0 = arith.constant 0 : i32
    return %arg0, %c0_i32 : i32, i32
  }
}

</mosaic_0001>

<llo_original>
// kernel: tpu_custom_call.1
$region0: #{tpu_custom_call.1}
  #allocation0 [shape = 'u32[]', space=smem, size = 0x4, offset = 0x4, fixed_abs, tag = 'smem constant byte address 0x4 - core index']
  #allocation1 [shape = 'u32[144,128]{1,0:T(1,128)}', space=vmem, size = 0x12000, scoped, tag = 'internal scratch']
  %s0 = inlined_call_operand.vmem [shape: bf16[256,32], index: 0, kind: input, shape index: {}]
  %s1 = inlined_call_operand.vmem [shape: bf16[32,128], index: 1, kind: input, shape index: {}]
  %s2 = inlined_call_operand.vmem [shape: f32[4,32], index: 2, kind: input, shape index: {}]
  %s3 = inlined_call_operand.vmem [shape: f32[4,32], index: 3, kind: input, shape index: {}]
  %s4 = inlined_call_operand.hbm [shape: bf16[256,128], index: 4, kind: output, shape index: {0}]
  %s5 = inlined_call_operand.vmem [shape: f32[256,4], index: 5, kind: output, shape index: {1}]
  %s6 = inlined_call_operand.vmem [shape: f32[256,4], index: 6, kind: output, shape index: {2}]
  %7 = xla_tuple %s4, %s5, %s6
  %s8 = sld [smem:[#allocation0]]
  $region65: #{tpu_custom_call.1} parent=0
    _
  %s10 = ssub.s32 1, %s8
  %s11 = scalar_select 0, %s10, %s8
  $region1: #{tpu_custom_call.1} parent=0
    #allocation2 [shape = 'u8[65536]{0}', space=vmem, size = 0x10000, scoped, tag = 'output window, operand 0']
    #allocation3 [shape = 's32[2]{0}', space=sflag, size = 0x8, scoped, tag = 'scoped memory for tpu_custom_call.1']
    %12 = vsyncpa [#allocation3], 0
    %s13 = scalar_lea.sflag [#allocation3], 1
    %14 = vsyncpa %s13, 0
    loop: start=0, step=1, limit=4
    $region2: #{tpu_custom_call.1} parent=1 // loop_pre_header
      _
    $region3: #{tpu_custom_call.1} parent=1 // loop_header
      %s16 = sphi 0, %s20
      %p17 = scmp.ge.s32.totalorder %s16, 4
      %s26 = sphi 0, %s28
      %s29 = sphi 0, %s26
      %s30 = sphi 0, %s29
      %s46 = sphi 0, %s30
      %s50 = sphi 0, %s50
      %s52 = sphi 0, %s50
      %s53 = sphi 0, %s52
      %s67 = sphi 0, %s53
      %s71 = sphi 0, %s71
      %s73 = sphi 0, %s71
      %s74 = sphi 0, %s73
      %s88 = sphi 0, %s74
      %s92 = sphi 0, %s92
      %s94 = sphi 0, %s92
      %s95 = sphi 0, %s94
      %s109 = sphi 0, %s95
      %s115 = sphi 0, %s117
      %s118 = sphi 0, %s115
      %s119 = sphi 0, %s118
      %s135 = sphi 0, %s119
      %s141 = sphi 0, %s143
      %s144 = sphi 0, %s141
      %s145 = sphi 0, %s144
      %s161 = sphi 0, %s145
      %s167 = sphi 0, %s169
      %s170 = sphi 0, %s167
      %s171 = sphi 0, %s170
      %s187 = sphi 0, %s171
    $region4: #{tpu_custom_call.1} parent=1 // loop_header_branch
      %19 = sbr.rel (%p17) target = $region8
    $region5: #{tpu_custom_call.1} parent=1 // loop_body
      %s21 = ssub.s32 %s16, 1
      %s22 = ssub.s32 %s16, 2
      %s23 = sadd.s32 %s16, 1
      %s24 = ssub.s32 %s16, %s23
      %p25 = scmp.eq.s32.totalorder %s24, 0
      %s27 = sadd.s32 %s26, 1
      %s28 = scalar_select %p25, %s26, %s27
      %p31 = pneg %p25
      %p32 = scmp.eq.s32.totalorder %s16, 1
      %p33 = por %p31, %p32
      %p34 = scmp.ne.s32.totalorder %s26, %s29
      %p35 = scmp.eq.s32.totalorder %s16, 0
      %p36 = por %p34, %p35
      %p37 = scmp.ne.s32.totalorder %s26, %s29
      %p38 = scmp.eq.s32.totalorder %s21, 1
      %p39 = por %p37, %p38
      %p40 = scmp.ne.s32.totalorder %s29, %s30
      %p41 = scmp.eq.s32.totalorder %s21, 0
      %p42 = por %p40, %p41
      %p43 = scmp.ne.s32.totalorder %s29, %s30
      %p44 = scmp.eq.s32.totalorder %s22, 1
      %p45 = por %p43, %p44
      %p47 = scmp.ne.s32.totalorder %s30, %s46
      %p48 = scmp.eq.s32.totalorder %s22, 0
      %p49 = por %p47, %p48
      %s51 = sadd.s32 %s50, 1
      %p54 = scmp.eq.s32.totalorder %s16, 1
      %p55 = scmp.ne.s32.totalorder %s50, %s52
      %p56 = scmp.eq.s32.totalorder %s16, 0
      %p57 = por %p55, %p56
      %p58 = scmp.ne.s32.totalorder %s50, %s52
      %p59 = scmp.eq.s32.totalorder %s21, 1
      %p60 = por %p58, %p59
      %p61 = scmp.ne.s32.totalorder %s52, %s53
      %p62 = scmp.eq.s32.totalorder %s21, 0
      %p63 = por %p61, %p62
      %p64 = scmp.ne.s32.totalorder %s52, %s53
      %p65 = scmp.eq.s32.totalorder %s22, 1
      %p66 = por %p64, %p65
      %p68 = scmp.ne.s32.totalorder %s53, %s67
      %p69 = scmp.eq.s32.totalorder %s22, 0
      %p70 = por %p68, %p69
      %s72 = sadd.s32 %s71, 1
      %p75 = scmp.eq.s32.totalorder %s16, 1
      %p76 = scmp.ne.s32.totalorder %s71, %s73
      %p77 = scmp.eq.s32.totalorder %s16, 0
      %p78 = por %p76, %p77
      %p79 = scmp.ne.s32.totalorder %s71, %s73
      %p80 = scmp.eq.s32.totalorder %s21, 1
      %p81 = por %p79, %p80
      %p82 = scmp.ne.s32.totalorder %s73, %s74
      %p83 = scmp.eq.s32.totalorder %s21, 0
      %p84 = por %p82, %p83
      %p85 = scmp.ne.s32.totalorder %s73, %s74
      %p86 = scmp.eq.s32.totalorder %s22, 1
      %p87 = por %p85, %p86
      %p89 = scmp.ne.s32.totalorder %s74, %s88
      %p90 = scmp.eq.s32.totalorder %s22, 0
      %p91 = por %p89, %p90
      %s93 = sadd.s32 %s92, 1
      %p96 = scmp.eq.s32.totalorder %s16, 1
      %p97 = scmp.ne.s32.totalorder %s92, %s94
      %p98 = scmp.eq.s32.totalorder %s16, 0
      %p99 = por %p97, %p98
      %p100 = scmp.ne.s32.totalorder %s92, %s94
      %p101 = scmp.eq.s32.totalorder %s21, 1
      %p102 = por %p100, %p101
      %p103 = scmp.ne.s32.totalorder %s94, %s95
      %p104 = scmp.eq.s32.totalorder %s21, 0
      %p105 = por %p103, %p104
      %p106 = scmp.ne.s32.totalorder %s94, %s95
      %p107 = scmp.eq.s32.totalorder %s22, 1
      %p108 = por %p106, %p107
      %p110 = scmp.ne.s32.totalorder %s95, %s109
      %p111 = scmp.eq.s32.totalorder %s22, 0
      %p112 = por %p110, %p111
      %s113 = ssub.s32 %s16, %s23
      %p114 = scmp.eq.s32.totalorder %s113, 0
      %s116 = sadd.s32 %s115, 1
      %s117 = scalar_select %p114, %s115, %s116
      %p120 = pneg %p114
      %p121 = scmp.eq.s32.totalorder %s16, 1
      %p122 = por %p120, %p121
      %p123 = scmp.ne.s32.totalorder %s115, %s118
      %p124 = scmp.eq.s32.totalorder %s16, 0
      %p125 = por %p123, %p124
      %p126 = scmp.ne.s32.totalorder %s115, %s118
      %p127 = scmp.eq.s32.totalorder %s21, 1
      %p128 = por %p126, %p127
      %p129 = scmp.ne.s32.totalorder %s118, %s119
      %p130 = scmp.eq.s32.totalorder %s21, 0
      %p131 = por %p129, %p130
      %p132 = scmp.ne.s32.totalorder %s118, %s119
      %p133 = scmp.eq.s32.totalorder %s22, 1
      %p134 = por %p132, %p133
      %p136 = scmp.ne.s32.totalorder %s119, %s135
      %p137 = scmp.eq.s32.totalorder %s22, 0
      %p138 = por %p136, %p137
      %s139 = ssub.s32 %s16, %s23
      %p140 = scmp.eq.s32.totalorder %s139, 0
      %s142 = sadd.s32 %s141, 1
      %s143 = scalar_select %p140, %s141, %s142
      %p146 = pneg %p140
      %p147 = scmp.eq.s32.totalorder %s16, 1
      %p148 = por %p146, %p147
      %p149 = scmp.ne.s32.totalorder %s141, %s144
      %p150 = scmp.eq.s32.totalorder %s16, 0
      %p151 = por %p149, %p150
      %p152 = scmp.ne.s32.totalorder %s141, %s144
      %p153 = scmp.eq.s32.totalorder %s21, 1
      %p154 = por %p152, %p153
      %p155 = scmp.ne.s32.totalorder %s144, %s145
      %p156 = scmp.eq.s32.totalorder %s21, 0
      %p157 = por %p155, %p156
      %p158 = scmp.ne.s32.totalorder %s144, %s145
      %p159 = scmp.eq.s32.totalorder %s22, 1
      %p160 = por %p158, %p159
      %p162 = scmp.ne.s32.totalorder %s145, %s161
      %p163 = scmp.eq.s32.totalorder %s22, 0
      %p164 = por %p162, %p163
      %s165 = ssub.s32 %s16, %s23
      %p166 = scmp.eq.s32.totalorder %s165, 0
      %s168 = sadd.s32 %s167, 1
      %s169 = scalar_select %p166, %s167, %s168
      %p172 = pneg %p166
      %p173 = scmp.eq.s32.totalorder %s16, 1
      %p174 = por %p172, %p173
      %p175 = scmp.ne.s32.totalorder %s167, %s170
      %p176 = scmp.eq.s32.totalorder %s16, 0
      %p177 = por %p175, %p176
      %p178 = scmp.ne.s32.totalorder %s167, %s170
      %p179 = scmp.eq.s32.totalorder %s21, 1
      %p180 = por %p178, %p179
      %p181 = scmp.ne.s32.totalorder %s170, %s171
      %p182 = scmp.eq.s32.totalorder %s21, 0
      %p183 = por %p181, %p182
      %p184 = scmp.ne.s32.totalorder %s170, %s171
      %p185 = scmp.eq.s32.totalorder %s22, 1
      %p186 = por %p184, %p185
      %p188 = scmp.ne.s32.totalorder %s171, %s187
      %p189 = scmp.eq.s32.totalorder %s22, 0
      %p190 = por %p188, %p189
      %p191 = scmp.le.s32.totalorder 1, %s16
      %p192 = scmp.lt.s32.totalorder %s16, 3
      %p193 = pnand %p191, %p192
      %p194 = pneg %p193
      // Predicated region
      $region9: #{tpu_custom_call.1} parent=5 // pred_check
        _
      $region10: #{tpu_custom_call.1} parent=5 // pred_check_branch
        %196 = sbr.rel (%p193) target = $region12
      $region11: #{tpu_custom_call.1} parent=5 // pred_region
        %s197 = ssub.s32 %s16, 1
        // Predicated region
        $region13: #{tpu_custom_call.1} parent=11 // pred_check
          %p198 = pneg %p63
        $region14: #{tpu_custom_call.1} parent=11 // pred_check_branch
          %200 = sbr.rel (%p198) target = $region16
        $region15: #{tpu_custom_call.1} parent=11 // pred_region
          _
        $region16: #{tpu_custom_call.1} parent=11 // pred_fallthru
          _
        // Predicated region
        $region17: #{tpu_custom_call.1} parent=11 // pred_check
          %p201 = pneg %p84
        $region18: #{tpu_custom_call.1} parent=11 // pred_check_branch
          %203 = sbr.rel (%p201) target = $region20
        $region19: #{tpu_custom_call.1} parent=11 // pred_region
          _
        $region20: #{tpu_custom_call.1} parent=11 // pred_fallthru
          _
        // Predicated region
        $region21: #{tpu_custom_call.1} parent=11 // pred_check
          %p204 = pneg %p105
        $region22: #{tpu_custom_call.1} parent=11 // pred_check_branch
          %206 = sbr.rel (%p204) target = $region24
        $region23: #{tpu_custom_call.1} parent=11 // pred_region
          _
        $region24: #{tpu_custom_call.1} parent=11 // pred_fallthru
          _
      $region12: #{tpu_custom_call.1} parent=5 // pred_fallthru
        _
      %p207 = scmp.lt.s32.totalorder %s16, 2
      // Predicated region
      $region25: #{tpu_custom_call.1} parent=5 // pred_check
        %p208 = pneg %p207
      $region26: #{tpu_custom_call.1} parent=5 // pred_check_branch
        %210 = sbr.rel (%p208) target = $region28
      $region27: #{tpu_custom_call.1} parent=5 // pred_region
        // Predicated region
        $region29: #{tpu_custom_call.1} parent=27 // pred_check
          %p211 = pneg %p36
        $region30: #{tpu_custom_call.1} parent=27 // pred_check_branch
          %213 = sbr.rel (%p211) target = $region32
        $region31: #{tpu_custom_call.1} parent=27 // pred_region
          %s214 = smul.u32 16, %s16
          %p215 = scmp.lt.s32.totalorder %s214, 31
          %s216 = scalar_select %p215, %s214, 31
          %s217 = smul.addr %s216, 4
          %s218 = scalar_lea.vmem %s0, %s217
          %s219 = smul.u32 16, %s16
        $region32: #{tpu_custom_call.1} parent=27 // pred_fallthru
          _
      $region28: #{tpu_custom_call.1} parent=5 // pred_fallthru
        _
      %p220 = scmp.le.s32.totalorder 1, %s16
      %p221 = scmp.lt.s32.totalorder %s16, 3
      %p222 = pnand %p220, %p221
      %p223 = pneg %p222
      // Predicated region
      $region33: #{tpu_custom_call.1} parent=5 // pred_check
        _
      $region34: #{tpu_custom_call.1} parent=5 // pred_check_branch
        %225 = sbr.rel (%p222) target = $region36
      $region35: #{tpu_custom_call.1} parent=5 // pred_region
        %s226 = ssub.s32 %s16, 1
        %s227 = smul.u32 16, %s21
        %p228 = scmp.lt.s32.totalorder %s227, 31
        %s229 = scalar_select %p228, %s227, 31
        %s230 = smul.addr %s229, 4
        %s231 = scalar_lea.vmem %s0, %s230
        %p232 = pneg %p42
        %p233 = pneg %p39
        %p234 = pneg %p63
        %p235 = pneg %p60
        %p236 = pneg %p84
        %p237 = pneg %p81
        %p238 = pneg %p105
        %p239 = pneg %p102
        %p240 = pneg %p131
        %p241 = pneg %p128
        %s242 = sand.u32 %s118, 1
        %s243 = scalar_lea.sflag [#allocation3], %s242
        %s244 = sand.u32 %s118, 1
        %s245 = smul.addr %s244, 64
        %s246 = scalar_lea.vmem [#allocation2], %s245
        %p247 = pneg %p157
        %p248 = pneg %p154
        %s249 = smul.u32 16, %s21
        %p250 = scmp.lt.s32.totalorder %s249, 31
        %s251 = scalar_select %p250, %s249, 31
        %s252 = smul.addr %s251, 8
        %s253 = scalar_lea.vmem %s5, %s252
        %p254 = pneg %p183
        %p255 = pneg %p180
        %s256 = smul.u32 16, %s21
        %p257 = scmp.lt.s32.totalorder %s256, 31
        %s258 = scalar_select %p257, %s256, 31
        %s259 = smul.addr %s258, 8
        %s260 = scalar_lea.vmem %s6, %s259
        %s261 = smul.u32 16, %s21
        %p262 = scmp.lt.s32.totalorder %s261, 31
        %s263 = scalar_select %p262, %s261, 31
        %s264 = smul.addr %s263, 4
        %s265 = scalar_lea.vmem %s0, %s264
        %s266 = smul.u32 16, %s21
        %s267 = smul.u32 16, %s21
        %s268 = smul.u32 16, %s21
        %p269 = scmp.lt.s32.totalorder %s268, 31
        %s270 = scalar_select %p269, %s268, 31
        %s271 = smul.addr %s270, 8
        %s272 = scalar_lea.vmem %s5, %s271
        %s273 = smul.u32 16, %s21
        %s274 = smul.u32 16, %s21
        %p275 = scmp.lt.s32.totalorder %s274, 31
        %s276 = scalar_select %p275, %s274, 31
        %s277 = smul.addr %s276, 8
        %s278 = scalar_lea.vmem %s6, %s277
        %s279 = smul.u32 16, %s21
        %v281 = vld [vmem:[%s265] sm:$0xf]
        %v282 = vld [vmem:[%s265 + $0x4] sm:$0xf]
        %v283 = vld [vmem:[%s265 + $0x8] sm:$0xf]
        %v284 = vld [vmem:[%s265 + $0xc] sm:$0xf]
        %v285 = vld [vmem:[%s265 + $0x10] sm:$0xf]
        %v286 = vld [vmem:[%s265 + $0x14] sm:$0xf]
        %v287 = vld [vmem:[%s265 + $0x18] sm:$0xf]
        %v288 = vld [vmem:[%s265 + $0x1c] sm:$0xf]
        %v289 = vld [vmem:[%s265 + $0x20] sm:$0xf]
        %v290 = vld [vmem:[%s265 + $0x24] sm:$0xf]
        %v291 = vld [vmem:[%s265 + $0x28] sm:$0xf]
        %v292 = vld [vmem:[%s265 + $0x2c] sm:$0xf]
        %v293 = vld [vmem:[%s265 + $0x30] sm:$0xf]
        %v294 = vld [vmem:[%s265 + $0x34] sm:$0xf]
        %v295 = vld [vmem:[%s265 + $0x38] sm:$0xf]
        %v296 = vld [vmem:[%s265 + $0x3c] sm:$0xf]
        %v297 = vld [vmem:[%s1] sm:$0xf]
        %v298 = vld [vmem:[%s1 + $0x4] sm:$0xf]
        %v299 = vld [vmem:[%s1 + $0x8] sm:$0xf]
        %v300 = vld [vmem:[%s1 + $0xc] sm:$0xf]
        %v317 = vunpack.c.l.b16 %v281
        %v318 = vunpack.c.l.b16 %v282
        %v319 = vunpack.c.l.b16 %v283
        %v320 = vunpack.c.l.b16 %v284
        %v321 = vunpack.c.l.b16 %v285
        %v322 = vunpack.c.l.b16 %v286
        %v323 = vunpack.c.l.b16 %v287
        %v324 = vunpack.c.l.b16 %v288
        %v325 = vunpack.c.l.b16 %v289
        %v326 = vunpack.c.l.b16 %v290
        %v327 = vunpack.c.l.b16 %v291
        %v328 = vunpack.c.l.b16 %v292
        %v329 = vunpack.c.l.b16 %v293
        %v330 = vunpack.c.l.b16 %v294
        %v331 = vunpack.c.l.b16 %v295
        %v332 = vunpack.c.l.b16 %v296
        %v333 = vpack.c.b16 %v318, %v317
        %v334 = vpack.c.b16 %v320, %v319
        %v335 = vpack.c.b16 %v322, %v321
        %v336 = vpack.c.b16 %v324, %v323
        %v337 = vpack.c.b16 %v326, %v325
        %v338 = vpack.c.b16 %v328, %v327
        %v339 = vpack.c.b16 %v330, %v329
        %v340 = vpack.c.b16 %v332, %v331
        %v345 = vunpack.c.l.b16 %v297
        %v346 = vunpack.c.l.b16 %v298
        %v347 = vunpack.c.l.b16 %v299
        %v348 = vunpack.c.l.b16 %v300
        %v349 = vpack.c.b16 %v346, %v345
        %v350 = vpack.c.b16 %v348, %v347
        %vm353 = vcmask 261120
        %v355 = vsel %vm353, %v333, 0
        %v358 = vsel %vm353, %v334, 0
        %v361 = vsel %vm353, %v335, 0
        %v364 = vsel %vm353, %v336, 0
        %v367 = vsel %vm353, %v337, 0
        %v370 = vsel %vm353, %v338, 0
        %v373 = vsel %vm353, %v339, 0
        %v376 = vsel %vm353, %v340, 0
        %378 = vmatprep.subr.bf16.mxu0 0
        %379 = vmatpush1.bf16.msra.mxu0 %v349
        %380 = vmatprep.subr.bf16.mxu0 0
        %381 = vmatpush1.bf16.msra.mxu0 %v350
        %382 = vmatprep.subr.bf16.mxu0 0
        %383 = vmatpush1.bf16.msra.mxu0 0
        %384 = vmatprep.subr.bf16.mxu0 0
        %385 = vmatpush1.bf16.msra.mxu0 0
        %386 = vmatprep.subr.bf16.mxu0 0
        %387 = vmatpush1.bf16.msra.mxu0 0
        %388 = vmatprep.subr.bf16.mxu0 0
        %389 = vmatpush1.bf16.msra.mxu0 0
        %390 = vmatprep.subr.bf16.mxu0 0
        %391 = vmatpush1.bf16.msra.mxu0 0
        %392 = vmatprep.subr.bf16.mxu0 0
        %393 = vmatpush1.bf16.msra.mxu0 0
        %394 = vmatprep.subr.bf16.mxu0 0
        %395 = vmatpush1.bf16.msra.mxu0 0
        %396 = vmatprep.subr.bf16.mxu0 0
        %397 = vmatpush1.bf16.msra.mxu0 0
        %398 = vmatprep.subr.bf16.mxu0 0
        %399 = vmatpush1.bf16.msra.mxu0 0
        %400 = vmatprep.subr.bf16.mxu0 0
        %401 = vmatpush1.bf16.msra.mxu0 0
        %402 = vmatprep.subr.bf16.mxu0 0
        %403 = vmatpush1.bf16.msra.mxu0 0
        %404 = vmatprep.subr.bf16.mxu0 0
        %405 = vmatpush1.bf16.msra.mxu0 0
        %406 = vmatprep.subr.bf16.mxu0 0
        %407 = vmatpush1.bf16.msra.mxu0 0
        %408 = vmatprep.subr.bf16.mxu0 0
        %409 = vmatpush1.bf16.msra.mxu0 0
        %410 = vmatprep.mubr.bf16.mxu0 0
        %411 = vmatmul.mubr.bf16.gmra.mrb[0].mxu0 %v355
        %v412 = vpop.f32.mrb[0].mxu0
        %v413 = vadd.f32 0.0, %v412
        %v414 = vpop.f32.mrb[0].mxu0
        %v415 = vpop.f32.mrb[0].mxu0
        %v416 = vadd.f32 0.0, %v415
        %v417 = vpop.f32.mrb[0].mxu0
        %418 = vmatprep.mubr.bf16.mxu0 0
        %419 = vmatmul.mubr.bf16.gmra.mrb[0].mxu0 %v358
        %v420 = vpop.f32.mrb[0].mxu0
        %v421 = vadd.f32 0.0, %v420
        %v422 = vpop.f32.mrb[0].mxu0
        %v423 = vpop.f32.mrb[0].mxu0
        %v424 = vadd.f32 0.0, %v423
        %v425 = vpop.f32.mrb[0].mxu0
        %426 = vmatprep.mubr.bf16.mxu0 0
        %427 = vmatmul.mubr.bf16.gmra.mrb[0].mxu0 %v361
        %v428 = vpop.f32.mrb[0].mxu0
        %v429 = vadd.f32 0.0, %v428
        %v430 = vpop.f32.mrb[0].mxu0
        %v431 = vpop.f32.mrb[0].mxu0
        %v432 = vadd.f32 0.0, %v431
        %v433 = vpop.f32.mrb[0].mxu0
        %434 = vmatprep.mubr.bf16.mxu0 0
        %435 = vmatmul.mubr.bf16.gmra.mrb[0].mxu0 %v364
        %v436 = vpop.f32.mrb[0].mxu0
        %v437 = vadd.f32 0.0, %v436
        %v438 = vpop.f32.mrb[0].mxu0
        %v439 = vpop.f32.mrb[0].mxu0
        %v440 = vadd.f32 0.0, %v439
        %v441 = vpop.f32.mrb[0].mxu0
        %442 = vmatprep.mubr.bf16.mxu0 0
        %443 = vmatmul.mubr.bf16.gmra.mrb[0].mxu0 %v367
        %v444 = vpop.f32.mrb[0].mxu0
        %v445 = vadd.f32 0.0, %v444
        %v446 = vpop.f32.mrb[0].mxu0
        %v447 = vpop.f32.mrb[0].mxu0
        %v448 = vadd.f32 0.0, %v447
        %v449 = vpop.f32.mrb[0].mxu0
        %450 = vmatprep.mubr.bf16.mxu0 0
        %451 = vmatmul.mubr.bf16.gmra.mrb[0].mxu0 %v370
        %v452 = vpop.f32.mrb[0].mxu0
        %v453 = vadd.f32 0.0, %v452
        %v454 = vpop.f32.mrb[0].mxu0
        %v455 = vpop.f32.mrb[0].mxu0
        %v456 = vadd.f32 0.0, %v455
        %v457 = vpop.f32.mrb[0].mxu0
        %458 = vmatprep.mubr.bf16.mxu0 0
        %459 = vmatmul.mubr.bf16.gmra.mrb[0].mxu0 %v373
        %v460 = vpop.f32.mrb[0].mxu0
        %v461 = vadd.f32 0.0, %v460
        %v462 = vpop.f32.mrb[0].mxu0
        %v463 = vpop.f32.mrb[0].mxu0
        %v464 = vadd.f32 0.0, %v463
        %v465 = vpop.f32.mrb[0].mxu0
        %466 = vmatprep.mubr.bf16.mxu0 0
        %467 = vmatmul.mubr.bf16.gmra.mrb[0].mxu0 %v376
        %v468 = vpop.f32.mrb[0].mxu0
        %v469 = vadd.f32 0.0, %v468
        %v470 = vpop.f32.mrb[0].mxu0
        %v471 = vpop.f32.mrb[0].mxu0
        %v472 = vadd.f32 0.0, %v471
        %v473 = vpop.f32.mrb[0].mxu0
        %474 = vdwg.mxu0
        %v475 = vld [vmem:[%s2] sm:$0xf]
        %v476 = vld [vmem:[%s3] sm:$0xf]
        %v477 = vlaneseq
        %v478 = vshrl.u32 %v477, 7
        %v479 = vsub.s32 0, %v478
        %v480 = vrot.slane %v475, %v479
        %v481 = vmul.f32 %v413, %v480
        %v482 = vmul.f32 %v416, %v480
        %v483 = vmul.f32 %v421, %v480
        %v484 = vmul.f32 %v424, %v480
        %v485 = vmul.f32 %v429, %v480
        %v486 = vmul.f32 %v432, %v480
        %v487 = vmul.f32 %v437, %v480
        %v488 = vmul.f32 %v440, %v480
        %v489 = vmul.f32 %v445, %v480
        %v490 = vmul.f32 %v448, %v480
        %v491 = vmul.f32 %v453, %v480
        %v492 = vmul.f32 %v456, %v480
        %v493 = vmul.f32 %v461, %v480
        %v494 = vmul.f32 %v464, %v480
        %v495 = vmul.f32 %v469, %v480
        %v496 = vmul.f32 %v472, %v480
        %v497 = vsel %vm353, %v481, 0.0
        %498 = vadd.xlane.f32.xlu0 %v497
        %v499 = vpop.xlane.xlu0 %498
        %v500 = vsel %vm353, %v482, 0.0
        %501 = vadd.xlane.f32.xlu0 %v500
        %v502 = vpop.xlane.xlu0 %501
        %v503 = vsel %vm353, %v483, 0.0
        %504 = vadd.xlane.f32.xlu0 %v503
        %v505 = vpop.xlane.xlu0 %504
        %v506 = vsel %vm353, %v484, 0.0
        %507 = vadd.xlane.f32.xlu0 %v506
        %v508 = vpop.xlane.xlu0 %507
        %v509 = vsel %vm353, %v485, 0.0
        %510 = vadd.xlane.f32.xlu0 %v509
        %v511 = vpop.xlane.xlu0 %510
        %v512 = vsel %vm353, %v486, 0.0
        %513 = vadd.xlane.f32.xlu0 %v512
        %v514 = vpop.xlane.xlu0 %513
        %v515 = vsel %vm353, %v487, 0.0
        %516 = vadd.xlane.f32.xlu0 %v515
        %v517 = vpop.xlane.xlu0 %516
        %v518 = vsel %vm353, %v488, 0.0
        %519 = vadd.xlane.f32.xlu0 %v518
        %v520 = vpop.xlane.xlu0 %519
        %v521 = vsel %vm353, %v489, 0.0
        %522 = vadd.xlane.f32.xlu0 %v521
        %v523 = vpop.xlane.xlu0 %522
        %v524 = vsel %vm353, %v490, 0.0
        %525 = vadd.xlane.f32.xlu0 %v524
        %v526 = vpop.xlane.xlu0 %525
        %v527 = vsel %vm353, %v491, 0.0
        %528 = vadd.xlane.f32.xlu0 %v527
        %v529 = vpop.xlane.xlu0 %528
        %v530 = vsel %vm353, %v492, 0.0
        %531 = vadd.xlane.f32.xlu0 %v530
        %v532 = vpop.xlane.xlu0 %531
        %v533 = vsel %vm353, %v493, 0.0
        %534 = vadd.xlane.f32.xlu0 %v533
        %v535 = vpop.xlane.xlu0 %534
        %v536 = vsel %vm353, %v494, 0.0
        %537 = vadd.xlane.f32.xlu0 %v536
        %v538 = vpop.xlane.xlu0 %537
        %v539 = vsel %vm353, %v495, 0.0
        %540 = vadd.xlane.f32.xlu0 %v539
        %v541 = vpop.xlane.xlu0 %540
        %v542 = vsel %vm353, %v496, 0.0
        %543 = vadd.xlane.f32.xlu0 %v542
        %v544 = vpop.xlane.xlu0 %543
        %v545 = vlaneseq
        %v546 = vshrl.u32 %v545, 7
        %v547 = vsub.s32 0, %v546
        %v548 = vrot.slane %v476, %v547
        %v549 = vmul.f32 %v413, %v548
        %v550 = vmul.f32 %v416, %v548
        %v551 = vmul.f32 %v421, %v548
        %v552 = vmul.f32 %v424, %v548
        %v553 = vmul.f32 %v429, %v548
        %v554 = vmul.f32 %v432, %v548
        %v555 = vmul.f32 %v437, %v548
        %v556 = vmul.f32 %v440, %v548
        %v557 = vmul.f32 %v445, %v548
        %v558 = vmul.f32 %v448, %v548
        %v559 = vmul.f32 %v453, %v548
        %v560 = vmul.f32 %v456, %v548
        %v561 = vmul.f32 %v461, %v548
        %v562 = vmul.f32 %v464, %v548
        %v563 = vmul.f32 %v469, %v548
        %v564 = vmul.f32 %v472, %v548
        %v565 = vsel %vm353, %v549, 0.0
        %566 = vadd.xlane.f32.xlu0 %v565
        %v567 = vpop.xlane.xlu0 %566
        %v568 = vsel %vm353, %v550, 0.0
        %569 = vadd.xlane.f32.xlu0 %v568
        %v570 = vpop.xlane.xlu0 %569
        %v571 = vsel %vm353, %v551, 0.0
        %572 = vadd.xlane.f32.xlu0 %v571
        %v573 = vpop.xlane.xlu0 %572
        %v574 = vsel %vm353, %v552, 0.0
        %575 = vadd.xlane.f32.xlu0 %v574
        %v576 = vpop.xlane.xlu0 %575
        %v577 = vsel %vm353, %v553, 0.0
        %578 = vadd.xlane.f32.xlu0 %v577
        %v579 = vpop.xlane.xlu0 %578
        %v580 = vsel %vm353, %v554, 0.0
        %581 = vadd.xlane.f32.xlu0 %v580
        %v582 = vpop.xlane.xlu0 %581
        %v583 = vsel %vm353, %v555, 0.0
        %584 = vadd.xlane.f32.xlu0 %v583
        %v585 = vpop.xlane.xlu0 %584
        %v586 = vsel %vm353, %v556, 0.0
        %587 = vadd.xlane.f32.xlu0 %v586
        %v588 = vpop.xlane.xlu0 %587
        %v589 = vsel %vm353, %v557, 0.0
        %590 = vadd.xlane.f32.xlu0 %v589
        %v591 = vpop.xlane.xlu0 %590
        %v592 = vsel %vm353, %v558, 0.0
        %593 = vadd.xlane.f32.xlu0 %v592
        %v594 = vpop.xlane.xlu0 %593
        %v595 = vsel %vm353, %v559, 0.0
        %596 = vadd.xlane.f32.xlu0 %v595
        %v597 = vpop.xlane.xlu0 %596
        %v598 = vsel %vm353, %v560, 0.0
        %599 = vadd.xlane.f32.xlu0 %v598
        %v600 = vpop.xlane.xlu0 %599
        %v601 = vsel %vm353, %v561, 0.0
        %602 = vadd.xlane.f32.xlu0 %v601
        %v603 = vpop.xlane.xlu0 %602
        %v604 = vsel %vm353, %v562, 0.0
        %605 = vadd.xlane.f32.xlu0 %v604
        %v606 = vpop.xlane.xlu0 %605
        %v607 = vsel %vm353, %v563, 0.0
        %608 = vadd.xlane.f32.xlu0 %v607
        %v609 = vpop.xlane.xlu0 %608
        %v610 = vsel %vm353, %v564, 0.0
        %611 = vadd.xlane.f32.xlu0 %v610
        %v612 = vpop.xlane.xlu0 %611
        %v613 = vlaneseq
        %v614 = vshrl.u32 %v613, 7
        %v615 = vsub.s32 1, %v614
        %v616 = vrot.slane %v475, %v615
        %618 = vrot.lane.b32.xlu0 %v616, 32
        %v619 = vpop.permute.xlu0 %618
        %v621 = vmul.f32 %v413, %v619
        %v622 = vmul.f32 %v416, %v619
        %v623 = vmul.f32 %v421, %v619
        %v624 = vmul.f32 %v424, %v619
        %v625 = vmul.f32 %v429, %v619
        %v626 = vmul.f32 %v432, %v619
        %v627 = vmul.f32 %v437, %v619
        %v628 = vmul.f32 %v440, %v619
        %v629 = vmul.f32 %v445, %v619
        %v630 = vmul.f32 %v448, %v619
        %v631 = vmul.f32 %v453, %v619
        %v632 = vmul.f32 %v456, %v619
        %v633 = vmul.f32 %v461, %v619
        %v634 = vmul.f32 %v464, %v619
        %v635 = vmul.f32 %v469, %v619
        %v636 = vmul.f32 %v472, %v619
        %653 = vrot.lane.b32.xlu0 %v621, 96
        %v654 = vpop.permute.xlu0 %653
        %655 = vrot.lane.b32.xlu0 %v622, 96
        %v656 = vpop.permute.xlu0 %655
        %657 = vrot.lane.b32.xlu0 %v623, 96
        %v658 = vpop.permute.xlu0 %657
        %659 = vrot.lane.b32.xlu0 %v624, 96
        %v660 = vpop.permute.xlu0 %659
        %661 = vrot.lane.b32.xlu0 %v625, 96
        %v662 = vpop.permute.xlu0 %661
        %663 = vrot.lane.b32.xlu0 %v626, 96
        %v664 = vpop.permute.xlu0 %663
        %665 = vrot.lane.b32.xlu0 %v627, 96
        %v666 = vpop.permute.xlu0 %665
        %667 = vrot.lane.b32.xlu0 %v628, 96
        %v668 = vpop.permute.xlu0 %667
        %669 = vrot.lane.b32.xlu0 %v629, 96
        %v670 = vpop.permute.xlu0 %669
        %671 = vrot.lane.b32.xlu0 %v630, 96
        %v672 = vpop.permute.xlu0 %671
        %673 = vrot.lane.b32.xlu0 %v631, 96
        %v674 = vpop.permute.xlu0 %673
        %675 = vrot.lane.b32.xlu0 %v632, 96
        %v676 = vpop.permute.xlu0 %675
        %677 = vrot.lane.b32.xlu0 %v633, 96
        %v678 = vpop.permute.xlu0 %677
        %679 = vrot.lane.b32.xlu0 %v634, 96
        %v680 = vpop.permute.xlu0 %679
        %681 = vrot.lane.b32.xlu0 %v635, 96
        %v682 = vpop.permute.xlu0 %681
        %683 = vrot.lane.b32.xlu0 %v636, 96
        %v684 = vpop.permute.xlu0 %683
        %v701 = vsel %vm353, %v654, 0.0
        %702 = vadd.xlane.f32.xlu0 %v701
        %v703 = vpop.xlane.xlu0 %702
        %v704 = vsel %vm353, %v656, 0.0
        %705 = vadd.xlane.f32.xlu0 %v704
        %v706 = vpop.xlane.xlu0 %705
        %v707 = vsel %vm353, %v658, 0.0
        %708 = vadd.xlane.f32.xlu0 %v707
        %v709 = vpop.xlane.xlu0 %708
        %v710 = vsel %vm353, %v660, 0.0
        %711 = vadd.xlane.f32.xlu0 %v710
        %v712 = vpop.xlane.xlu0 %711
        %v713 = vsel %vm353, %v662, 0.0
        %714 = vadd.xlane.f32.xlu0 %v713
        %v715 = vpop.xlane.xlu0 %714
        %v716 = vsel %vm353, %v664, 0.0
        %717 = vadd.xlane.f32.xlu0 %v716
        %v718 = vpop.xlane.xlu0 %717
        %v719 = vsel %vm353, %v666, 0.0
        %720 = vadd.xlane.f32.xlu0 %v719
        %v721 = vpop.xlane.xlu0 %720
        %v722 = vsel %vm353, %v668, 0.0
        %723 = vadd.xlane.f32.xlu0 %v722
        %v724 = vpop.xlane.xlu0 %723
        %v725 = vsel %vm353, %v670, 0.0
        %726 = vadd.xlane.f32.xlu0 %v725
        %v727 = vpop.xlane.xlu0 %726
        %v728 = vsel %vm353, %v672, 0.0
        %729 = vadd.xlane.f32.xlu0 %v728
        %v730 = vpop.xlane.xlu0 %729
        %v731 = vsel %vm353, %v674, 0.0
        %732 = vadd.xlane.f32.xlu0 %v731
        %v733 = vpop.xlane.xlu0 %732
        %v734 = vsel %vm353, %v676, 0.0
        %735 = vadd.xlane.f32.xlu0 %v734
        %v736 = vpop.xlane.xlu0 %735
        %v737 = vsel %vm353, %v678, 0.0
        %738 = vadd.xlane.f32.xlu0 %v737
        %v739 = vpop.xlane.xlu0 %738
        %v740 = vsel %vm353, %v680, 0.0
        %741 = vadd.xlane.f32.xlu0 %v740
        %v742 = vpop.xlane.xlu0 %741
        %v743 = vsel %vm353, %v682, 0.0
        %744 = vadd.xlane.f32.xlu0 %v743
        %v745 = vpop.xlane.xlu0 %744
        %v746 = vsel %vm353, %v684, 0.0
        %747 = vadd.xlane.f32.xlu0 %v746
        %v748 = vpop.xlane.xlu0 %747
        %v749 = vlaneseq
        %v750 = vshrl.u32 %v749, 7
        %v751 = vsub.s32 1, %v750
        %v752 = vrot.slane %v476, %v751
        %754 = vrot.lane.b32.xlu0 %v752, 32
        %v755 = vpop.permute.xlu0 %754
        %v757 = vmul.f32 %v413, %v755
        %v758 = vmul.f32 %v416, %v755
        %v759 = vmul.f32 %v421, %v755
        %v760 = vmul.f32 %v424, %v755
        %v761 = vmul.f32 %v429, %v755
        %v762 = vmul.f32 %v432, %v755
        %v763 = vmul.f32 %v437, %v755
        %v764 = vmul.f32 %v440, %v755
        %v765 = vmul.f32 %v445, %v755
        %v766 = vmul.f32 %v448, %v755
        %v767 = vmul.f32 %v453, %v755
        %v768 = vmul.f32 %v456, %v755
        %v769 = vmul.f32 %v461, %v755
        %v770 = vmul.f32 %v464, %v755
        %v771 = vmul.f32 %v469, %v755
        %v772 = vmul.f32 %v472, %v755
        %789 = vrot.lane.b32.xlu0 %v757, 96
        %v790 = vpop.permute.xlu0 %789
        %791 = vrot.lane.b32.xlu0 %v758, 96
        %v792 = vpop.permute.xlu0 %791
        %793 = vrot.lane.b32.xlu0 %v759, 96
        %v794 = vpop.permute.xlu0 %793
        %795 = vrot.lane.b32.xlu0 %v760, 96
        %v796 = vpop.permute.xlu0 %795
        %797 = vrot.lane.b32.xlu0 %v761, 96
        %v798 = vpop.permute.xlu0 %797
        %799 = vrot.lane.b32.xlu0 %v762, 96
        %v800 = vpop.permute.xlu0 %799
        %801 = vrot.lane.b32.xlu0 %v763, 96
        %v802 = vpop.permute.xlu0 %801
        %803 = vrot.lane.b32.xlu0 %v764, 96
        %v804 = vpop.permute.xlu0 %803
        %805 = vrot.lane.b32.xlu0 %v765, 96
        %v806 = vpop.permute.xlu0 %805
        %807 = vrot.lane.b32.xlu0 %v766, 96
        %v808 = vpop.permute.xlu0 %807
        %809 = vrot.lane.b32.xlu0 %v767, 96
        %v810 = vpop.permute.xlu0 %809
        %811 = vrot.lane.b32.xlu0 %v768, 96
        %v812 = vpop.permute.xlu0 %811
        %813 = vrot.lane.b32.xlu0 %v769, 96
        %v814 = vpop.permute.xlu0 %813
        %815 = vrot.lane.b32.xlu0 %v770, 96
        %v816 = vpop.permute.xlu0 %815
        %817 = vrot.lane.b32.xlu0 %v771, 96
        %v818 = vpop.permute.xlu0 %817
        %819 = vrot.lane.b32.xlu0 %v772, 96
        %v820 = vpop.permute.xlu0 %819
        %v837 = vsel %vm353, %v790, 0.0
        %838 = vadd.xlane.f32.xlu0 %v837
        %v839 = vpop.xlane.xlu0 %838
        %v840 = vsel %vm353, %v792, 0.0
        %841 = vadd.xlane.f32.xlu0 %v840
        %v842 = vpop.xlane.xlu0 %841
        %v843 = vsel %vm353, %v794, 0.0
        %844 = vadd.xlane.f32.xlu0 %v843
        %v845 = vpop.xlane.xlu0 %844
        %v846 = vsel %vm353, %v796, 0.0
        %847 = vadd.xlane.f32.xlu0 %v846
        %v848 = vpop.xlane.xlu0 %847
        %v849 = vsel %vm353, %v798, 0.0
        %850 = vadd.xlane.f32.xlu0 %v849
        %v851 = vpop.xlane.xlu0 %850
        %v852 = vsel %vm353, %v800, 0.0
        %853 = vadd.xlane.f32.xlu0 %v852
        %v854 = vpop.xlane.xlu0 %853
        %v855 = vsel %vm353, %v802, 0.0
        %856 = vadd.xlane.f32.xlu0 %v855
        %v857 = vpop.xlane.xlu0 %856
        %v858 = vsel %vm353, %v804, 0.0
        %859 = vadd.xlane.f32.xlu0 %v858
        %v860 = vpop.xlane.xlu0 %859
        %v861 = vsel %vm353, %v806, 0.0
        %862 = vadd.xlane.f32.xlu0 %v861
        %v863 = vpop.xlane.xlu0 %862
        %v864 = vsel %vm353, %v808, 0.0
        %865 = vadd.xlane.f32.xlu0 %v864
        %v866 = vpop.xlane.xlu0 %865
        %v867 = vsel %vm353, %v810, 0.0
        %868 = vadd.xlane.f32.xlu0 %v867
        %v869 = vpop.xlane.xlu0 %868
        %v870 = vsel %vm353, %v812, 0.0
        %871 = vadd.xlane.f32.xlu0 %v870
        %v872 = vpop.xlane.xlu0 %871
        %v873 = vsel %vm353, %v814, 0.0
        %874 = vadd.xlane.f32.xlu0 %v873
        %v875 = vpop.xlane.xlu0 %874
        %v876 = vsel %vm353, %v816, 0.0
        %877 = vadd.xlane.f32.xlu0 %v876
        %v878 = vpop.xlane.xlu0 %877
        %v879 = vsel %vm353, %v818, 0.0
        %880 = vadd.xlane.f32.xlu0 %v879
        %v881 = vpop.xlane.xlu0 %880
        %v882 = vsel %vm353, %v820, 0.0
        %883 = vadd.xlane.f32.xlu0 %v882
        %v884 = vpop.xlane.xlu0 %883
        %v885 = vlaneseq
        %v886 = vshrl.u32 %v885, 7
        %v887 = vsub.s32 2, %v886
        %v888 = vrot.slane %v475, %v887
        %890 = vrot.lane.b32.xlu0 %v888, 64
        %v891 = vpop.permute.xlu0 %890
        %v893 = vmul.f32 %v413, %v891
        %v894 = vmul.f32 %v416, %v891
        %v895 = vmul.f32 %v421, %v891
        %v896 = vmul.f32 %v424, %v891
        %v897 = vmul.f32 %v429, %v891
        %v898 = vmul.f32 %v432, %v891
        %v899 = vmul.f32 %v437, %v891
        %v900 = vmul.f32 %v440, %v891
        %v901 = vmul.f32 %v445, %v891
        %v902 = vmul.f32 %v448, %v891
        %v903 = vmul.f32 %v453, %v891
        %v904 = vmul.f32 %v456, %v891
        %v905 = vmul.f32 %v461, %v891
        %v906 = vmul.f32 %v464, %v891
        %v907 = vmul.f32 %v469, %v891
        %v908 = vmul.f32 %v472, %v891
        %925 = vrot.lane.b32.xlu0 %v893, 64
        %v926 = vpop.permute.xlu0 %925
        %927 = vrot.lane.b32.xlu0 %v894, 64
        %v928 = vpop.permute.xlu0 %927
        %929 = vrot.lane.b32.xlu0 %v895, 64
        %v930 = vpop.permute.xlu0 %929
        %931 = vrot.lane.b32.xlu0 %v896, 64
        %v932 = vpop.permute.xlu0 %931
        %933 = vrot.lane.b32.xlu0 %v897, 64
        %v934 = vpop.permute.xlu0 %933
        %935 = vrot.lane.b32.xlu0 %v898, 64
        %v936 = vpop.permute.xlu0 %935
        %937 = vrot.lane.b32.xlu0 %v899, 64
        %v938 = vpop.permute.xlu0 %937
        %939 = vrot.lane.b32.xlu0 %v900, 64
        %v940 = vpop.permute.xlu0 %939
        %941 = vrot.lane.b32.xlu0 %v901, 64
        %v942 = vpop.permute.xlu0 %941
        %943 = vrot.lane.b32.xlu0 %v902, 64
        %v944 = vpop.permute.xlu0 %943
        %945 = vrot.lane.b32.xlu0 %v903, 64
        %v946 = vpop.permute.xlu0 %945
        %947 = vrot.lane.b32.xlu0 %v904, 64
        %v948 = vpop.permute.xlu0 %947
        %949 = vrot.lane.b32.xlu0 %v905, 64
        %v950 = vpop.permute.xlu0 %949
        %951 = vrot.lane.b32.xlu0 %v906, 64
        %v952 = vpop.permute.xlu0 %951
        %953 = vrot.lane.b32.xlu0 %v907, 64
        %v954 = vpop.permute.xlu0 %953
        %955 = vrot.lane.b32.xlu0 %v908, 64
        %v956 = vpop.permute.xlu0 %955
        %v973 = vsel %vm353, %v926, 0.0
        %974 = vadd.xlane.f32.xlu0 %v973
        %v975 = vpop.xlane.xlu0 %974
        %v976 = vsel %vm353, %v928, 0.0
        %977 = vadd.xlane.f32.xlu0 %v976
        %v978 = vpop.xlane.xlu0 %977
        %v979 = vsel %vm353, %v930, 0.0
        %980 = vadd.xlane.f32.xlu0 %v979
        %v981 = vpop.xlane.xlu0 %980
        %v982 = vsel %vm353, %v932, 0.0
        %983 = vadd.xlane.f32.xlu0 %v982
        %v984 = vpop.xlane.xlu0 %983
        %v985 = vsel %vm353, %v934, 0.0
        %986 = vadd.xlane.f32.xlu0 %v985
        %v987 = vpop.xlane.xlu0 %986
        %v988 = vsel %vm353, %v936, 0.0
        %989 = vadd.xlane.f32.xlu0 %v988
        %v990 = vpop.xlane.xlu0 %989
        %v991 = vsel %vm353, %v938, 0.0
        %992 = vadd.xlane.f32.xlu0 %v991
        %v993 = vpop.xlane.xlu0 %992
        %v994 = vsel %vm353, %v940, 0.0
        %995 = vadd.xlane.f32.xlu0 %v994
        %v996 = vpop.xlane.xlu0 %995
        %v997 = vsel %vm353, %v942, 0.0
        %998 = vadd.xlane.f32.xlu0 %v997
        %v999 = vpop.xlane.xlu0 %998
        %v1000 = vsel %vm353, %v944, 0.0
        %1001 = vadd.xlane.f32.xlu0 %v1000
        %v1002 = vpop.xlane.xlu0 %1001
        %v1003 = vsel %vm353, %v946, 0.0
        %1004 = vadd.xlane.f32.xlu0 %v1003
        %v1005 = vpop.xlane.xlu0 %1004
        %v1006 = vsel %vm353, %v948, 0.0
        %1007 = vadd.xlane.f32.xlu0 %v1006
        %v1008 = vpop.xlane.xlu0 %1007
        %v1009 = vsel %vm353, %v950, 0.0
        %1010 = vadd.xlane.f32.xlu0 %v1009
        %v1011 = vpop.xlane.xlu0 %1010
        %v1012 = vsel %vm353, %v952, 0.0
        %1013 = vadd.xlane.f32.xlu0 %v1012
        %v1014 = vpop.xlane.xlu0 %1013
        %v1015 = vsel %vm353, %v954, 0.0
        %1016 = vadd.xlane.f32.xlu0 %v1015
        %v1017 = vpop.xlane.xlu0 %1016
        %v1018 = vsel %vm353, %v956, 0.0
        %1019 = vadd.xlane.f32.xlu0 %v1018
        %v1020 = vpop.xlane.xlu0 %1019
        %v1021 = vlaneseq
        %v1022 = vshrl.u32 %v1021, 7
        %v1023 = vsub.s32 2, %v1022
        %v1024 = vrot.slane %v476, %v1023
        %1026 = vrot.lane.b32.xlu0 %v1024, 64
        %v1027 = vpop.permute.xlu0 %1026
        %v1029 = vmul.f32 %v413, %v1027
        %v1030 = vmul.f32 %v416, %v1027
        %v1031 = vmul.f32 %v421, %v1027
        %v1032 = vmul.f32 %v424, %v1027
        %v1033 = vmul.f32 %v429, %v1027
        %v1034 = vmul.f32 %v432, %v1027
        %v1035 = vmul.f32 %v437, %v1027
        %v1036 = vmul.f32 %v440, %v1027
        %v1037 = vmul.f32 %v445, %v1027
        %v1038 = vmul.f32 %v448, %v1027
        %v1039 = vmul.f32 %v453, %v1027
        %v1040 = vmul.f32 %v456, %v1027
        %v1041 = vmul.f32 %v461, %v1027
        %v1042 = vmul.f32 %v464, %v1027
        %v1043 = vmul.f32 %v469, %v1027
        %v1044 = vmul.f32 %v472, %v1027
        %1061 = vrot.lane.b32.xlu0 %v1029, 64
        %v1062 = vpop.permute.xlu0 %1061
        %1063 = vrot.lane.b32.xlu0 %v1030, 64
        %v1064 = vpop.permute.xlu0 %1063
        %1065 = vrot.lane.b32.xlu0 %v1031, 64
        %v1066 = vpop.permute.xlu0 %1065
        %1067 = vrot.lane.b32.xlu0 %v1032, 64
        %v1068 = vpop.permute.xlu0 %1067
        %1069 = vrot.lane.b32.xlu0 %v1033, 64
        %v1070 = vpop.permute.xlu0 %1069
        %1071 = vrot.lane.b32.xlu0 %v1034, 64
        %v1072 = vpop.permute.xlu0 %1071
        %1073 = vrot.lane.b32.xlu0 %v1035, 64
        %v1074 = vpop.permute.xlu0 %1073
        %1075 = vrot.lane.b32.xlu0 %v1036, 64
        %v1076 = vpop.permute.xlu0 %1075
        %1077 = vrot.lane.b32.xlu0 %v1037, 64
        %v1078 = vpop.permute.xlu0 %1077
        %1079 = vrot.lane.b32.xlu0 %v1038, 64
        %v1080 = vpop.permute.xlu0 %1079
        %1081 = vrot.lane.b32.xlu0 %v1039, 64
        %v1082 = vpop.permute.xlu0 %1081
        %1083 = vrot.lane.b32.xlu0 %v1040, 64
        %v1084 = vpop.permute.xlu0 %1083
        %1085 = vrot.lane.b32.xlu0 %v1041, 64
        %v1086 = vpop.permute.xlu0 %1085
        %1087 = vrot.lane.b32.xlu0 %v1042, 64
        %v1088 = vpop.permute.xlu0 %1087
        %1089 = vrot.lane.b32.xlu0 %v1043, 64
        %v1090 = vpop.permute.xlu0 %1089
        %1091 = vrot.lane.b32.xlu0 %v1044, 64
        %v1092 = vpop.permute.xlu0 %1091
        %v1109 = vsel %vm353, %v1062, 0.0
        %1110 = vadd.xlane.f32.xlu0 %v1109
        %v1111 = vpop.xlane.xlu0 %1110
        %v1112 = vsel %vm353, %v1064, 0.0
        %1113 = vadd.xlane.f32.xlu0 %v1112
        %v1114 = vpop.xlane.xlu0 %1113
        %v1115 = vsel %vm353, %v1066, 0.0
        %1116 = vadd.xlane.f32.xlu0 %v1115
        %v1117 = vpop.xlane.xlu0 %1116
        %v1118 = vsel %vm353, %v1068, 0.0
        %1119 = vadd.xlane.f32.xlu0 %v1118
        %v1120 = vpop.xlane.xlu0 %1119
        %v1121 = vsel %vm353, %v1070, 0.0
        %1122 = vadd.xlane.f32.xlu0 %v1121
        %v1123 = vpop.xlane.xlu0 %1122
        %v1124 = vsel %vm353, %v1072, 0.0
        %1125 = vadd.xlane.f32.xlu0 %v1124
        %v1126 = vpop.xlane.xlu0 %1125
        %v1127 = vsel %vm353, %v1074, 0.0
        %1128 = vadd.xlane.f32.xlu0 %v1127
        %v1129 = vpop.xlane.xlu0 %1128
        %v1130 = vsel %vm353, %v1076, 0.0
        %1131 = vadd.xlane.f32.xlu0 %v1130
        %v1132 = vpop.xlane.xlu0 %1131
        %v1133 = vsel %vm353, %v1078, 0.0
        %1134 = vadd.xlane.f32.xlu0 %v1133
        %v1135 = vpop.xlane.xlu0 %1134
        %v1136 = vsel %vm353, %v1080, 0.0
        %1137 = vadd.xlane.f32.xlu0 %v1136
        %v1138 = vpop.xlane.xlu0 %1137
        %v1139 = vsel %vm353, %v1082, 0.0
        %1140 = vadd.xlane.f32.xlu0 %v1139
        %v1141 = vpop.xlane.xlu0 %1140
        %v1142 = vsel %vm353, %v1084, 0.0
        %1143 = vadd.xlane.f32.xlu0 %v1142
        %v1144 = vpop.xlane.xlu0 %1143
        %v1145 = vsel %vm353, %v1086, 0.0
        %1146 = vadd.xlane.f32.xlu0 %v1145
        %v1147 = vpop.xlane.xlu0 %1146
        %v1148 = vsel %vm353, %v1088, 0.0
        %1149 = vadd.xlane.f32.xlu0 %v1148
        %v1150 = vpop.xlane.xlu0 %1149
        %v1151 = vsel %vm353, %v1090, 0.0
        %1152 = vadd.xlane.f32.xlu0 %v1151
        %v1153 = vpop.xlane.xlu0 %1152
        %v1154 = vsel %vm353, %v1092, 0.0
        %1155 = vadd.xlane.f32.xlu0 %v1154
        %v1156 = vpop.xlane.xlu0 %1155
        %v1157 = vlaneseq
        %v1158 = vshrl.u32 %v1157, 7
        %v1159 = vsub.s32 3, %v1158
        %v1160 = vrot.slane %v475, %v1159
        %1162 = vrot.lane.b32.xlu0 %v1160, 96
        %v1163 = vpop.permute.xlu0 %1162
        %v1165 = vmul.f32 %v413, %v1163
        %v1166 = vmul.f32 %v416, %v1163
        %v1167 = vmul.f32 %v421, %v1163
        %v1168 = vmul.f32 %v424, %v1163
        %v1169 = vmul.f32 %v429, %v1163
        %v1170 = vmul.f32 %v432, %v1163
        %v1171 = vmul.f32 %v437, %v1163
        %v1172 = vmul.f32 %v440, %v1163
        %v1173 = vmul.f32 %v445, %v1163
        %v1174 = vmul.f32 %v448, %v1163
        %v1175 = vmul.f32 %v453, %v1163
        %v1176 = vmul.f32 %v456, %v1163
        %v1177 = vmul.f32 %v461, %v1163
        %v1178 = vmul.f32 %v464, %v1163
        %v1179 = vmul.f32 %v469, %v1163
        %v1180 = vmul.f32 %v472, %v1163
        %1197 = vrot.lane.b32.xlu0 %v1165, 32
        %v1198 = vpop.permute.xlu0 %1197
        %1199 = vrot.lane.b32.xlu0 %v1166, 32
        %v1200 = vpop.permute.xlu0 %1199
        %1201 = vrot.lane.b32.xlu0 %v1167, 32
        %v1202 = vpop.permute.xlu0 %1201
        %1203 = vrot.lane.b32.xlu0 %v1168, 32
        %v1204 = vpop.permute.xlu0 %1203
        %1205 = vrot.lane.b32.xlu0 %v1169, 32
        %v1206 = vpop.permute.xlu0 %1205
        %1207 = vrot.lane.b32.xlu0 %v1170, 32
        %v1208 = vpop.permute.xlu0 %1207
        %1209 = vrot.lane.b32.xlu0 %v1171, 32
        %v1210 = vpop.permute.xlu0 %1209
        %1211 = vrot.lane.b32.xlu0 %v1172, 32
        %v1212 = vpop.permute.xlu0 %1211
        %1213 = vrot.lane.b32.xlu0 %v1173, 32
        %v1214 = vpop.permute.xlu0 %1213
        %1215 = vrot.lane.b32.xlu0 %v1174, 32
        %v1216 = vpop.permute.xlu0 %1215
        %1217 = vrot.lane.b32.xlu0 %v1175, 32
        %v1218 = vpop.permute.xlu0 %1217
        %1219 = vrot.lane.b32.xlu0 %v1176, 32
        %v1220 = vpop.permute.xlu0 %1219
        %1221 = vrot.lane.b32.xlu0 %v1177, 32
        %v1222 = vpop.permute.xlu0 %1221
        %1223 = vrot.lane.b32.xlu0 %v1178, 32
        %v1224 = vpop.permute.xlu0 %1223
        %1225 = vrot.lane.b32.xlu0 %v1179, 32
        %v1226 = vpop.permute.xlu0 %1225
        %1227 = vrot.lane.b32.xlu0 %v1180, 32
        %v1228 = vpop.permute.xlu0 %1227
        %v1245 = vsel %vm353, %v1198, 0.0
        %1246 = vadd.xlane.f32.xlu0 %v1245
        %v1247 = vpop.xlane.xlu0 %1246
        %v1248 = vsel %vm353, %v1200, 0.0
        %1249 = vadd.xlane.f32.xlu0 %v1248
        %v1250 = vpop.xlane.xlu0 %1249
        %v1251 = vsel %vm353, %v1202, 0.0
        %1252 = vadd.xlane.f32.xlu0 %v1251
        %v1253 = vpop.xlane.xlu0 %1252
        %v1254 = vsel %vm353, %v1204, 0.0
        %1255 = vadd.xlane.f32.xlu0 %v1254
        %v1256 = vpop.xlane.xlu0 %1255
        %v1257 = vsel %vm353, %v1206, 0.0
        %1258 = vadd.xlane.f32.xlu0 %v1257
        %v1259 = vpop.xlane.xlu0 %1258
        %v1260 = vsel %vm353, %v1208, 0.0
        %1261 = vadd.xlane.f32.xlu0 %v1260
        %v1262 = vpop.xlane.xlu0 %1261
        %v1263 = vsel %vm353, %v1210, 0.0
        %1264 = vadd.xlane.f32.xlu0 %v1263
        %v1265 = vpop.xlane.xlu0 %1264
        %v1266 = vsel %vm353, %v1212, 0.0
        %1267 = vadd.xlane.f32.xlu0 %v1266
        %v1268 = vpop.xlane.xlu0 %1267
        %v1269 = vsel %vm353, %v1214, 0.0
        %1270 = vadd.xlane.f32.xlu0 %v1269
        %v1271 = vpop.xlane.xlu0 %1270
        %v1272 = vsel %vm353, %v1216, 0.0
        %1273 = vadd.xlane.f32.xlu0 %v1272
        %v1274 = vpop.xlane.xlu0 %1273
        %v1275 = vsel %vm353, %v1218, 0.0
        %1276 = vadd.xlane.f32.xlu0 %v1275
        %v1277 = vpop.xlane.xlu0 %1276
        %v1278 = vsel %vm353, %v1220, 0.0
        %1279 = vadd.xlane.f32.xlu0 %v1278
        %v1280 = vpop.xlane.xlu0 %1279
        %v1281 = vsel %vm353, %v1222, 0.0
        %1282 = vadd.xlane.f32.xlu0 %v1281
        %v1283 = vpop.xlane.xlu0 %1282
        %v1284 = vsel %vm353, %v1224, 0.0
        %1285 = vadd.xlane.f32.xlu0 %v1284
        %v1286 = vpop.xlane.xlu0 %1285
        %v1287 = vsel %vm353, %v1226, 0.0
        %1288 = vadd.xlane.f32.xlu0 %v1287
        %v1289 = vpop.xlane.xlu0 %1288
        %v1290 = vsel %vm353, %v1228, 0.0
        %1291 = vadd.xlane.f32.xlu0 %v1290
        %v1292 = vpop.xlane.xlu0 %1291
        %v1293 = vlaneseq
        %v1294 = vshrl.u32 %v1293, 7
        %v1295 = vsub.s32 3, %v1294
        %v1296 = vrot.slane %v476, %v1295
        %1298 = vrot.lane.b32.xlu0 %v1296, 96
        %v1299 = vpop.permute.xlu0 %1298
        %v1301 = vmul.f32 %v413, %v1299
        %v1302 = vmul.f32 %v416, %v1299
        %v1303 = vmul.f32 %v421, %v1299
        %v1304 = vmul.f32 %v424, %v1299
        %v1305 = vmul.f32 %v429, %v1299
        %v1306 = vmul.f32 %v432, %v1299
        %v1307 = vmul.f32 %v437, %v1299
        %v1308 = vmul.f32 %v440, %v1299
        %v1309 = vmul.f32 %v445, %v1299
        %v1310 = vmul.f32 %v448, %v1299
        %v1311 = vmul.f32 %v453, %v1299
        %v1312 = vmul.f32 %v456, %v1299
        %v1313 = vmul.f32 %v461, %v1299
        %v1314 = vmul.f32 %v464, %v1299
        %v1315 = vmul.f32 %v469, %v1299
        %v1316 = vmul.f32 %v472, %v1299
        %1333 = vrot.lane.b32.xlu0 %v1301, 32
        %v1334 = vpop.permute.xlu0 %1333
        %1335 = vrot.lane.b32.xlu0 %v1302, 32
        %v1336 = vpop.permute.xlu0 %1335
        %1337 = vrot.lane.b32.xlu0 %v1303, 32
        %v1338 = vpop.permute.xlu0 %1337
        %1339 = vrot.lane.b32.xlu0 %v1304, 32
        %v1340 = vpop.permute.xlu0 %1339
        %1341 = vrot.lane.b32.xlu0 %v1305, 32
        %v1342 = vpop.permute.xlu0 %1341
        %1343 = vrot.lane.b32.xlu0 %v1306, 32
        %v1344 = vpop.permute.xlu0 %1343
        %1345 = vrot.lane.b32.xlu0 %v1307, 32
        %v1346 = vpop.permute.xlu0 %1345
        %1347 = vrot.lane.b32.xlu0 %v1308, 32
        %v1348 = vpop.permute.xlu0 %1347
        %1349 = vrot.lane.b32.xlu0 %v1309, 32
        %v1350 = vpop.permute.xlu0 %1349
        %1351 = vrot.lane.b32.xlu0 %v1310, 32
        %v1352 = vpop.permute.xlu0 %1351
        %1353 = vrot.lane.b32.xlu0 %v1311, 32
        %v1354 = vpop.permute.xlu0 %1353
        %1355 = vrot.lane.b32.xlu0 %v1312, 32
        %v1356 = vpop.permute.xlu0 %1355
        %1357 = vrot.lane.b32.xlu0 %v1313, 32
        %v1358 = vpop.permute.xlu0 %1357
        %1359 = vrot.lane.b32.xlu0 %v1314, 32
        %v1360 = vpop.permute.xlu0 %1359
        %1361 = vrot.lane.b32.xlu0 %v1315, 32
        %v1362 = vpop.permute.xlu0 %1361
        %1363 = vrot.lane.b32.xlu0 %v1316, 32
        %v1364 = vpop.permute.xlu0 %1363
        %v1381 = vsel %vm353, %v1334, 0.0
        %1382 = vadd.xlane.f32.xlu0 %v1381
        %v1383 = vpop.xlane.xlu0 %1382
        %v1384 = vsel %vm353, %v1336, 0.0
        %1385 = vadd.xlane.f32.xlu0 %v1384
        %v1386 = vpop.xlane.xlu0 %1385
        %v1387 = vsel %vm353, %v1338, 0.0
        %1388 = vadd.xlane.f32.xlu0 %v1387
        %v1389 = vpop.xlane.xlu0 %1388
        %v1390 = vsel %vm353, %v1340, 0.0
        %1391 = vadd.xlane.f32.xlu0 %v1390
        %v1392 = vpop.xlane.xlu0 %1391
        %v1393 = vsel %vm353, %v1342, 0.0
        %1394 = vadd.xlane.f32.xlu0 %v1393
        %v1395 = vpop.xlane.xlu0 %1394
        %v1396 = vsel %vm353, %v1344, 0.0
        %1397 = vadd.xlane.f32.xlu0 %v1396
        %v1398 = vpop.xlane.xlu0 %1397
        %v1399 = vsel %vm353, %v1346, 0.0
        %1400 = vadd.xlane.f32.xlu0 %v1399
        %v1401 = vpop.xlane.xlu0 %1400
        %v1402 = vsel %vm353, %v1348, 0.0
        %1403 = vadd.xlane.f32.xlu0 %v1402
        %v1404 = vpop.xlane.xlu0 %1403
        %v1405 = vsel %vm353, %v1350, 0.0
        %1406 = vadd.xlane.f32.xlu0 %v1405
        %v1407 = vpop.xlane.xlu0 %1406
        %v1408 = vsel %vm353, %v1352, 0.0
        %1409 = vadd.xlane.f32.xlu0 %v1408
        %v1410 = vpop.xlane.xlu0 %1409
        %v1411 = vsel %vm353, %v1354, 0.0
        %1412 = vadd.xlane.f32.xlu0 %v1411
        %v1413 = vpop.xlane.xlu0 %1412
        %v1414 = vsel %vm353, %v1356, 0.0
        %1415 = vadd.xlane.f32.xlu0 %v1414
        %v1416 = vpop.xlane.xlu0 %1415
        %v1417 = vsel %vm353, %v1358, 0.0
        %1418 = vadd.xlane.f32.xlu0 %v1417
        %v1419 = vpop.xlane.xlu0 %1418
        %v1420 = vsel %vm353, %v1360, 0.0
        %1421 = vadd.xlane.f32.xlu0 %v1420
        %v1422 = vpop.xlane.xlu0 %1421
        %v1423 = vsel %vm353, %v1362, 0.0
        %1424 = vadd.xlane.f32.xlu0 %v1423
        %v1425 = vpop.xlane.xlu0 %1424
        %v1426 = vsel %vm353, %v1364, 0.0
        %1427 = vadd.xlane.f32.xlu0 %v1426
        %v1428 = vpop.xlane.xlu0 %1427
        %vm1429 = vcmask 7168
        %v1430 = vsel %vm1429, %v499, %v703
        %v1431 = vsel %vm1429, %v502, %v706
        %v1432 = vsel %vm1429, %v505, %v709
        %v1433 = vsel %vm1429, %v508, %v712
        %v1434 = vsel %vm1429, %v511, %v715
        %v1435 = vsel %vm1429, %v514, %v718
        %v1436 = vsel %vm1429, %v517, %v721
        %v1437 = vsel %vm1429, %v520, %v724
        %v1438 = vsel %vm1429, %v523, %v727
        %v1439 = vsel %vm1429, %v526, %v730
        %v1440 = vsel %vm1429, %v529, %v733
        %v1441 = vsel %vm1429, %v532, %v736
        %v1442 = vsel %vm1429, %v535, %v739
        %v1443 = vsel %vm1429, %v538, %v742
        %v1444 = vsel %vm1429, %v541, %v745
        %v1445 = vsel %vm1429, %v544, %v748
        %vm1446 = vcmask 15360
        %v1447 = vsel %vm1446, %v1430, %v975
        %v1448 = vsel %vm1446, %v1431, %v978
        %v1449 = vsel %vm1446, %v1432, %v981
        %v1450 = vsel %vm1446, %v1433, %v984
        %v1451 = vsel %vm1446, %v1434, %v987
        %v1452 = vsel %vm1446, %v1435, %v990
        %v1453 = vsel %vm1446, %v1436, %v993
        %v1454 = vsel %vm1446, %v1437, %v996
        %v1455 = vsel %vm1446, %v1438, %v999
        %v1456 = vsel %vm1446, %v1439, %v1002
        %v1457 = vsel %vm1446, %v1440, %v1005
        %v1458 = vsel %vm1446, %v1441, %v1008
        %v1459 = vsel %vm1446, %v1442, %v1011
        %v1460 = vsel %vm1446, %v1443, %v1014
        %v1461 = vsel %vm1446, %v1444, %v1017
        %v1462 = vsel %vm1446, %v1445, %v1020
        %vm1463 = vcmask 23552
        %v1464 = vsel %vm1463, %v1447, %v1247
        %v1465 = vsel %vm1463, %v1448, %v1250
        %v1466 = vsel %vm1463, %v1449, %v1253
        %v1467 = vsel %vm1463, %v1450, %v1256
        %v1468 = vsel %vm1463, %v1451, %v1259
        %v1469 = vsel %vm1463, %v1452, %v1262
        %v1470 = vsel %vm1463, %v1453, %v1265
        %v1471 = vsel %vm1463, %v1454, %v1268
        %v1472 = vsel %vm1463, %v1455, %v1271
        %v1473 = vsel %vm1463, %v1456, %v1274
        %v1474 = vsel %vm1463, %v1457, %v1277
        %v1475 = vsel %vm1463, %v1458, %v1280
        %v1476 = vsel %vm1463, %v1459, %v1283
        %v1477 = vsel %vm1463, %v1460, %v1286
        %v1478 = vsel %vm1463, %v1461, %v1289
        %v1479 = vsel %vm1463, %v1462, %v1292
        %vm1480 = vcmask 31744
        %1481 = vst.msk [vmem:[%s272] sm:$0xff] %vm1480, %v1464
        %1482 = vst.msk [vmem:[%s272 + $0x8] sm:$0xff] %vm1480, %v1465
        %1483 = vst.msk [vmem:[%s272 + $0x10] sm:$0xff] %vm1480, %v1466
        %1484 = vst.msk [vmem:[%s272 + $0x18] sm:$0xff] %vm1480, %v1467
        %1485 = vst.msk [vmem:[%s272 + $0x20] sm:$0xff] %vm1480, %v1468
        %1486 = vst.msk [vmem:[%s272 + $0x28] sm:$0xff] %vm1480, %v1469
        %1487 = vst.msk [vmem:[%s272 + $0x30] sm:$0xff] %vm1480, %v1470
        %1488 = vst.msk [vmem:[%s272 + $0x38] sm:$0xff] %vm1480, %v1471
        %1489 = vst.msk [vmem:[%s272 + $0x40] sm:$0xff] %vm1480, %v1472
        %1490 = vst.msk [vmem:[%s272 + $0x48] sm:$0xff] %vm1480, %v1473
        %1491 = vst.msk [vmem:[%s272 + $0x50] sm:$0xff] %vm1480, %v1474
        %1492 = vst.msk [vmem:[%s272 + $0x58] sm:$0xff] %vm1480, %v1475
        %1493 = vst.msk [vmem:[%s272 + $0x60] sm:$0xff] %vm1480, %v1476
        %1494 = vst.msk [vmem:[%s272 + $0x68] sm:$0xff] %vm1480, %v1477
        %1495 = vst.msk [vmem:[%s272 + $0x70] sm:$0xff] %vm1480, %v1478
        %1496 = vst.msk [vmem:[%s272 + $0x78] sm:$0xff] %vm1480, %v1479
        %v1497 = vsel %vm1429, %v567, %v839
        %v1498 = vsel %vm1429, %v570, %v842
        %v1499 = vsel %vm1429, %v573, %v845
        %v1500 = vsel %vm1429, %v576, %v848
        %v1501 = vsel %vm1429, %v579, %v851
        %v1502 = vsel %vm1429, %v582, %v854
        %v1503 = vsel %vm1429, %v585, %v857
        %v1504 = vsel %vm1429, %v588, %v860
        %v1505 = vsel %vm1429, %v591, %v863
        %v1506 = vsel %vm1429, %v594, %v866
        %v1507 = vsel %vm1429, %v597, %v869
        %v1508 = vsel %vm1429, %v600, %v872
        %v1509 = vsel %vm1429, %v603, %v875
        %v1510 = vsel %vm1429, %v606, %v878
        %v1511 = vsel %vm1429, %v609, %v881
        %v1512 = vsel %vm1429, %v612, %v884
        %v1513 = vsel %vm1446, %v1497, %v1111
        %v1514 = vsel %vm1446, %v1498, %v1114
        %v1515 = vsel %vm1446, %v1499, %v1117
        %v1516 = vsel %vm1446, %v1500, %v1120
        %v1517 = vsel %vm1446, %v1501, %v1123
        %v1518 = vsel %vm1446, %v1502, %v1126
        %v1519 = vsel %vm1446, %v1503, %v1129
        %v1520 = vsel %vm1446, %v1504, %v1132
        %v1521 = vsel %vm1446, %v1505, %v1135
        %v1522 = vsel %vm1446, %v1506, %v1138
        %v1523 = vsel %vm1446, %v1507, %v1141
        %v1524 = vsel %vm1446, %v1508, %v1144
        %v1525 = vsel %vm1446, %v1509, %v1147
        %v1526 = vsel %vm1446, %v1510, %v1150
        %v1527 = vsel %vm1446, %v1511, %v1153
        %v1528 = vsel %vm1446, %v1512, %v1156
        %v1529 = vsel %vm1463, %v1513, %v1383
        %v1530 = vsel %vm1463, %v1514, %v1386
        %v1531 = vsel %vm1463, %v1515, %v1389
        %v1532 = vsel %vm1463, %v1516, %v1392
        %v1533 = vsel %vm1463, %v1517, %v1395
        %v1534 = vsel %vm1463, %v1518, %v1398
        %v1535 = vsel %vm1463, %v1519, %v1401
        %v1536 = vsel %vm1463, %v1520, %v1404
        %v1537 = vsel %vm1463, %v1521, %v1407
        %v1538 = vsel %vm1463, %v1522, %v1410
        %v1539 = vsel %vm1463, %v1523, %v1413
        %v1540 = vsel %vm1463, %v1524, %v1416
        %v1541 = vsel %vm1463, %v1525, %v1419
        %v1542 = vsel %vm1463, %v1526, %v1422
        %v1543 = vsel %vm1463, %v1527, %v1425
        %v1544 = vsel %vm1463, %v1528, %v1428
        %1545 = vst.msk [vmem:[%s278] sm:$0xff] %vm1480, %v1529
        %1546 = vst.msk [vmem:[%s278 + $0x8] sm:$0xff] %vm1480, %v1530
        %1547 = vst.msk [vmem:[%s278 + $0x10] sm:$0xff] %vm1480, %v1531
        %1548 = vst.msk [vmem:[%s278 + $0x18] sm:$0xff] %vm1480, %v1532
        %1549 = vst.msk [vmem:[%s278 + $0x20] sm:$0xff] %vm1480, %v1533
        %1550 = vst.msk [vmem:[%s278 + $0x28] sm:$0xff] %vm1480, %v1534
        %1551 = vst.msk [vmem:[%s278 + $0x30] sm:$0xff] %vm1480, %v1535
        %1552 = vst.msk [vmem:[%s278 + $0x38] sm:$0xff] %vm1480, %v1536
        %1553 = vst.msk [vmem:[%s278 + $0x40] sm:$0xff] %vm1480, %v1537
        %1554 = vst.msk [vmem:[%s278 + $0x48] sm:$0xff] %vm1480, %v1538
        %1555 = vst.msk [vmem:[%s278 + $0x50] sm:$0xff] %vm1480, %v1539
        %1556 = vst.msk [vmem:[%s278 + $0x58] sm:$0xff] %vm1480, %v1540
        %1557 = vst.msk [vmem:[%s278 + $0x60] sm:$0xff] %vm1480, %v1541
        %1558 = vst.msk [vmem:[%s278 + $0x68] sm:$0xff] %vm1480, %v1542
        %1559 = vst.msk [vmem:[%s278 + $0x70] sm:$0xff] %vm1480, %v1543
        %1560 = vst.msk [vmem:[%s278 + $0x78] sm:$0xff] %vm1480, %v1544
        %v1561 = vpack.c.bf16 %v416, %v413
        %v1562 = vpack.c.bf16 %v424, %v421
        %v1563 = vpack.c.bf16 %v432, %v429
        %v1564 = vpack.c.bf16 %v440, %v437
        %v1565 = vpack.c.bf16 %v448, %v445
        %v1566 = vpack.c.bf16 %v456, %v453
        %v1567 = vpack.c.bf16 %v464, %v461
        %v1568 = vpack.c.bf16 %v472, %v469
        %v1577 = vunpack.c.l.b16 %v1561
        %v1578 = vunpack.c.h.b16 %v1561
        %v1579 = vunpack.c.l.b16 %v1562
        %v1580 = vunpack.c.h.b16 %v1562
        %v1581 = vunpack.c.l.b16 %v1563
        %v1582 = vunpack.c.h.b16 %v1563
        %v1583 = vunpack.c.l.b16 %v1564
        %v1584 = vunpack.c.h.b16 %v1564
        %v1585 = vunpack.c.l.b16 %v1565
        %v1586 = vunpack.c.h.b16 %v1565
        %v1587 = vunpack.c.l.b16 %v1566
        %v1588 = vunpack.c.h.b16 %v1566
        %v1589 = vunpack.c.l.b16 %v1567
        %v1590 = vunpack.c.h.b16 %v1567
        %v1591 = vunpack.c.l.b16 %v1568
        %v1592 = vunpack.c.h.b16 %v1568
        %v1593 = vpack.c.b16 %v1577, %v1577
        %v1594 = vpack.c.b16 %v1578, %v1578
        %v1595 = vpack.c.b16 %v1579, %v1579
        %v1596 = vpack.c.b16 %v1580, %v1580
        %v1597 = vpack.c.b16 %v1581, %v1581
        %v1598 = vpack.c.b16 %v1582, %v1582
        %v1599 = vpack.c.b16 %v1583, %v1583
        %v1600 = vpack.c.b16 %v1584, %v1584
        %v1601 = vpack.c.b16 %v1585, %v1585
        %v1602 = vpack.c.b16 %v1586, %v1586
        %v1603 = vpack.c.b16 %v1587, %v1587
        %v1604 = vpack.c.b16 %v1588, %v1588
        %v1605 = vpack.c.b16 %v1589, %v1589
        %v1606 = vpack.c.b16 %v1590, %v1590
        %v1607 = vpack.c.b16 %v1591, %v1591
        %v1608 = vpack.c.b16 %v1592, %v1592
        %1625 = vst [vmem:[%s246] sm:$0xf] %v1593
        %1626 = vst [vmem:[%s246 + $0x4] sm:$0xf] %v1594
        %1627 = vst [vmem:[%s246 + $0x8] sm:$0xf] %v1595
        %1628 = vst [vmem:[%s246 + $0xc] sm:$0xf] %v1596
        %1629 = vst [vmem:[%s246 + $0x10] sm:$0xf] %v1597
        %1630 = vst [vmem:[%s246 + $0x14] sm:$0xf] %v1598
        %1631 = vst [vmem:[%s246 + $0x18] sm:$0xf] %v1599
        %1632 = vst [vmem:[%s246 + $0x1c] sm:$0xf] %v1600
        %1633 = vst [vmem:[%s246 + $0x20] sm:$0xf] %v1601
        %1634 = vst [vmem:[%s246 + $0x24] sm:$0xf] %v1602
        %1635 = vst [vmem:[%s246 + $0x28] sm:$0xf] %v1603
        %1636 = vst [vmem:[%s246 + $0x2c] sm:$0xf] %v1604
        %1637 = vst [vmem:[%s246 + $0x30] sm:$0xf] %v1605
        %1638 = vst [vmem:[%s246 + $0x34] sm:$0xf] %v1606
        %1639 = vst [vmem:[%s246 + $0x38] sm:$0xf] %v1607
        %1640 = vst [vmem:[%s246 + $0x3c] sm:$0xf] %v1608
        %s1641 = sand.u32 %s118, 1
        %s1642 = scalar_lea.sflag [#allocation3], %s1641
        %s1643 = sand.u32 %s118, 1
        %s1644 = smul.addr %s1643, 64
        %s1645 = scalar_lea.vmem [#allocation2], %s1644
        %s1646 = smul.u32 16, %s21
        %p1647 = scmp.lt.s32.totalorder %s1646, 31
        %s1648 = scalar_select %p1647, %s1646, 31
        %s1649 = smul.addr %s1648, 8
        %s1650 = scalar_lea.vmem %s5, %s1649
        %s1651 = smul.u32 16, %s21
        %p1652 = scmp.lt.s32.totalorder %s1651, 31
        %s1653 = scalar_select %p1652, %s1651, 31
        %s1654 = smul.addr %s1653, 8
        %s1655 = scalar_lea.vmem %s6, %s1654
        // Predicated region
        $region37: #{tpu_custom_call.1} parent=35 // pred_check
          %p1656 = pneg %p128
        $region38: #{tpu_custom_call.1} parent=35 // pred_check_branch
          %1658 = sbr.rel (%p1656) target = $region40
        $region39: #{tpu_custom_call.1} parent=35 // pred_region
          %s1659 = smul.u32 16, %s21
          %s1661 = ssub.s32 1024, 1024
          %1662 = vsyncadd %s1642, %s1661
          %s1663 = smul.addr %s1659, 64
          %s1664 = scalar_lea.hbm %s4, %s1663
          %s1665 = sshll.u32 %s1645, 4
          %s1666 = int_to_ptr.vmem [resolvable:$true] %s1665
          %1671 = dma.vmem_to_hbm [thread:$0]  %s1666, 1024, %s1664, %s1642, 64, 64, 4
        $region40: #{tpu_custom_call.1} parent=35 // pred_fallthru
          _
        // Predicated region
        $region41: #{tpu_custom_call.1} parent=35 // pred_check
          %p1672 = pneg %p154
        $region42: #{tpu_custom_call.1} parent=35 // pred_check_branch
          %1674 = sbr.rel (%p1672) target = $region44
        $region43: #{tpu_custom_call.1} parent=35 // pred_region
          %s1675 = smul.u32 16, %s21
        $region44: #{tpu_custom_call.1} parent=35 // pred_fallthru
          _
        // Predicated region
        $region45: #{tpu_custom_call.1} parent=35 // pred_check
          %p1676 = pneg %p180
        $region46: #{tpu_custom_call.1} parent=35 // pred_check_branch
          %1678 = sbr.rel (%p1676) target = $region48
        $region47: #{tpu_custom_call.1} parent=35 // pred_region
          %s1679 = smul.u32 16, %s21
        $region48: #{tpu_custom_call.1} parent=35 // pred_fallthru
          _
      $region36: #{tpu_custom_call.1} parent=5 // pred_fallthru
        _
      %p1680 = scmp.le.s32.totalorder 2, %s16
      // Predicated region
      $region49: #{tpu_custom_call.1} parent=5 // pred_check
        %p1681 = pneg %p1680
      $region50: #{tpu_custom_call.1} parent=5 // pred_check_branch
        %1683 = sbr.rel (%p1681) target = $region52
      $region51: #{tpu_custom_call.1} parent=5 // pred_region
        %s1684 = ssub.s32 %s16, 2
        // Predicated region
        $region53: #{tpu_custom_call.1} parent=51 // pred_check
          %p1685 = pneg %p134
        $region54: #{tpu_custom_call.1} parent=51 // pred_check_branch
          %1687 = sbr.rel (%p1685) target = $region56
        $region55: #{tpu_custom_call.1} parent=51 // pred_region
          %s1688 = sand.u32 %s119, 1
          %s1689 = scalar_lea.sflag [#allocation3], %s1688
          %s1690 = sand.u32 %s119, 1
          %s1691 = smul.addr %s1690, 64
          %s1692 = scalar_lea.vmem [#allocation2], %s1691
          %1693 = dma.done %s1689, 1024
        $region56: #{tpu_custom_call.1} parent=51 // pred_fallthru
          _
        // Predicated region
        $region57: #{tpu_custom_call.1} parent=51 // pred_check
          %p1694 = pneg %p160
        $region58: #{tpu_custom_call.1} parent=51 // pred_check_branch
          %1696 = sbr.rel (%p1694) target = $region60
        $region59: #{tpu_custom_call.1} parent=51 // pred_region
          %s1697 = smul.u32 16, %s22
          %p1698 = scmp.lt.s32.totalorder %s1697, 31
          %s1699 = scalar_select %p1698, %s1697, 31
          %s1700 = smul.addr %s1699, 8
          %s1701 = scalar_lea.vmem %s5, %s1700
        $region60: #{tpu_custom_call.1} parent=51 // pred_fallthru
          _
        // Predicated region
        $region61: #{tpu_custom_call.1} parent=51 // pred_check
          %p1702 = pneg %p186
        $region62: #{tpu_custom_call.1} parent=51 // pred_check_branch
          %1704 = sbr.rel (%p1702) target = $region64
        $region63: #{tpu_custom_call.1} parent=51 // pred_region
          %s1705 = smul.u32 16, %s22
          %p1706 = scmp.lt.s32.totalorder %s1705, 31
          %s1707 = scalar_select %p1706, %s1705, 31
          %s1708 = smul.addr %s1707, 8
          %s1709 = scalar_lea.vmem %s6, %s1708
        $region64: #{tpu_custom_call.1} parent=51 // pred_fallthru
          _
      $region52: #{tpu_custom_call.1} parent=5 // pred_fallthru
        _
    $region6: #{tpu_custom_call.1} parent=1 // loop_footer
      %s20 = sadd.s32 1, %s16
    $region7: #{tpu_custom_call.1} parent=1 // loop_footer_branch
      %15 = sbr.rel target = $region3
    $region8: #{tpu_custom_call.1} parent=1 // loop_exit
      _
    %1710 = vsyncpa [#allocation3], 1
    %s1711 = scalar_lea.sflag [#allocation3], 1
    %1712 = vsyncpa %s1711, 1

</llo_original>
